<compile_context>
chip_gen: v5e
topology: v5e:2x2
jax: 0.10.0
libtpu: 0.0.40
codegen_flags: <defaults>
</compile_context>

<pallas_src>
import jax
import jax.numpy as jnp
from jax.experimental import pallas as pl
from jax.experimental.pallas import tpu as pltpu

# Architecture constants implied by Linear(231, 1024): input must be (N, 1, 128, 16).
H, W = 128, 16
C1, KW1 = 14, 2
C2, KW2 = 77, 4
STRIDE = 2
WO1 = (W - KW1) // STRIDE + 1        # 8
WO2 = (WO1 - KW2) // STRIDE + 1      # 3
K0 = H * W                           # 2048 (flattened input per sample)
N1, N1P = WO1 * C1, 128              # conv1 features 112 -> lane-padded 128
N2, N2P = WO2 * C2, 256              # conv2 features 231 -> lane-padded 256
NH = 1024                            # fc hidden


# ---------------------------------------------------------------------------
# Fused Pallas kernel: conv1 + conv2 + fc1 + fc2 (as a bf16 matmul chain)
# ---------------------------------------------------------------------------
def _disc_kernel(x_ref, w1_ref, b1_ref, w2_ref, b2_ref, w3_ref, b3_ref,
                 w4_ref, b4_ref, o_ref):
    # conv1 (block-Toeplitz matmul) + bias + ReLU; bf16 operands, f32 accumulation.
    y = jnp.dot(x_ref[...], w1_ref[...],
                preferred_element_type=jnp.float32) + b1_ref[...]
    y = jnp.maximum(y, 0.0).astype(jnp.bfloat16)
    # conv2
    y = jnp.dot(y, w2_ref[...],
                preferred_element_type=jnp.float32) + b2_ref[...]
    y = jnp.maximum(y, 0.0).astype(jnp.bfloat16)
    # fc1
    y = jnp.dot(y, w3_ref[...],
                preferred_element_type=jnp.float32) + b3_ref[...]
    y = jnp.maximum(y, 0.0)
    # fc2 (Linear(1024, 1)): VPU multiply + lane reduction; scalar bias from SMEM.
    r = jnp.sum(y * w4_ref[...].astype(jnp.float32), axis=-1) + b4_ref[0]
    o_ref[0, :] = r                                            # lane-dense row store


def discriminator_forward(prepped, x):
    N, C, h, w = x.shape
    assert (C, h, w) == (1, H, W), "architecture requires input (N, 1, 128, 16)"

    # Free row-major reshape; bf16 x halves its DMA bytes (under jit the convert
    # fuses with the upstream producer; at tiny N it is negligible either way).
    xf = x.reshape(N, K0)
    if xf.dtype != jnp.bfloat16:
        xf = xf.astype(jnp.bfloat16)

    # Batch block: full batch when small, otherwise 512-row blocks (bf16 x block
    # = 2 MB) so multiple blocks can shard across TensorCores on megacore parts.
    bm = N if N <= 512 else 512
    nblk = pl.cdiv(N, bm)
    grid = (nblk,)

    const = lambda i: (0, 0)                          # weights/biases stay resident
    resident = dict(pipeline_mode=pl.Buffered(1))     # single-buffer invariant blocks

    flops = 2 * N * (K0 * N1P + N1P * N2P + N2P * NH + NH)
    bytes_accessed = (2 * (N * K0 + K0 * N1P + N1P * N2P + N2P * NH + NH)   # bf16
                      + 4 * (N1P + N2P + NH + 1 + nblk * bm))               # f32

    out = pl.pallas_call(
        _disc_kernel,
        out_shape=jax.ShapeDtypeStruct((nblk, bm), jnp.float32),
        grid=grid,
        in_specs=[
            pl.BlockSpec((bm, K0), lambda i: (i, 0)),           # x block (bf16)
            pl.BlockSpec((K0, N1P), const, **resident),         # conv1 Toeplitz (bf16)
            pl.BlockSpec((1, N1P), const, **resident),          # conv1 bias (f32)
            pl.BlockSpec((N1P, N2P), const, **resident),        # conv2 Toeplitz (bf16)
            pl.BlockSpec((1, N2P), const, **resident),          # conv2 bias (f32)
            pl.BlockSpec((N2P, NH), const, **resident),         # fc1 rows permuted (bf16)
            pl.BlockSpec((1, NH), const, **resident),           # fc1 bias (f32)
            pl.BlockSpec((1, NH), const, **resident),           # fc2 weight row (bf16)
            pl.BlockSpec(memory_space=pltpu.MemorySpace.SMEM),  # fc2 bias scalar (f32)
        ],
        out_specs=pl.BlockSpec((1, bm), lambda i: (i, 0)),      # lane-dense output rows
        compiler_params=pltpu.CompilerParams(
            dimension_semantics=("parallel",),
            vmem_limit_bytes=32 * 1024 * 1024),
        cost_estimate=pl.CostEstimate(flops=flops, transcendentals=0,
                                      bytes_accessed=bytes_accessed),
    )(xf, prepped["w1"], prepped["b1"], prepped["w2"], prepped["b2"],
      prepped["w3"], prepped["b3"], prepped["w4"], prepped["b4"])

    # Drop rows produced from Pallas tail-block padding; restore (N, 1).
    return out.reshape(-1)[:N].reshape(N, 1)


# ---------------------------------------------------------------------------
# One-time parameter prep: convs -> block-Toeplitz matmuls, fc1 row permutation,
# lane padding, bf16 storage for the weight matrices.  Runs once, off the hot path.
# ---------------------------------------------------------------------------
def prepare_params(params):
    f32, bf16 = jnp.float32, jnp.bfloat16

    # conv1 -> (H*W, WO1*C1); y1 column layout is (w, c_out).
    w1 = params["c1_w"].reshape(C1, H, KW1)                    # (c_out, kh, kw)
    blk1 = jnp.transpose(w1, (1, 2, 0))                        # (kh, kw, c_out)
    t1 = jnp.zeros((H, W, WO1, C1), f32)
    for wo in range(WO1):
        t1 = t1.at[:, STRIDE * wo:STRIDE * wo + KW1, wo, :].set(blk1)
    w1_big = t1.reshape(K0, N1)
    b1_big = jnp.tile(params["c1_b"], WO1)                     # (112,)

    # conv2 -> (WO1*C1, WO2*C2); rows follow y1's (w, c_in), cols give y2 as (w2, c_out).
    w2 = params["c2_w"].reshape(C2, C1, KW2)                   # (c_out, c_in, kw)
    blk2 = jnp.transpose(w2, (2, 1, 0))                        # (kw, c_in, c_out)
    t2 = jnp.zeros((WO1, C1, WO2, C2), f32)
    for wo in range(WO2):
        t2 = t2.at[STRIDE * wo:STRIDE * wo + KW2, :, wo, :].set(blk2)
    w2_big = t2.reshape(N1, N2)
    b2_big = jnp.tile(params["c2_b"], WO2)                     # (231,)

    # fc1: permute rows once so it consumes y2's (w2, c_out) layout directly
    # (nn.Flatten order is (c_out, w2): feature index c*WO2 + w2).
    f1 = params["f1_w"].T.reshape(C2, WO2, NH).transpose(1, 0, 2).reshape(N2, NH)

    def pad2(a, r, c, dtype):
        return jnp.zeros((r, c), f32).at[:a.shape[0], :a.shape[1]].set(a).astype(dtype)

    return {
        "w1": pad2(w1_big, K0, N1P, bf16),
        "b1": pad2(b1_big.reshape(1, N1), 1, N1P, f32),
        "w2": pad2(w2_big, N1P, N2P, bf16),
        "b2": pad2(b2_big.reshape(1, N2), 1, N2P, f32),
        "w3": pad2(f1, N2P, NH, bf16),
        "b3": params["f1_b"].reshape(1, NH).astype(f32),
        "w4": params["f2_w"].reshape(1, NH).astype(bf16),
        "b4": params["f2_b"].reshape(1).astype(f32),           # SMEM scalar
    }


# ---------------------------------------------------------------------------
# Parameter init (deterministic, PyTorch-default-like uniform(-1/sqrt(fan_in), ..))
# ---------------------------------------------------------------------------
def init_params(key):
    ks = jax.random.split(key, 8)

    def u(k, shape, fan_in):
        bound = 1.0 / float(jnp.sqrt(float(fan_in)))
        return jax.random.uniform(k, shape, jnp.float32, -bound, bound)

    return {
        "c1_w": u(ks[0], (C1, 1, H, KW1), 1 * H * KW1),    # Conv2d(1, 14, (128, 2), stride=2)
        "c1_b": u(ks[1], (C1,), 1 * H * KW1),
        "c2_w": u(ks[2], (C2, C1, 1, KW2), C1 * 1 * KW2),  # Conv2d(14, 77, (1, 4), stride=2)
        "c2_b": u(ks[3], (C2,), C1 * 1 * KW2),
        "f1_w": u(ks[4], (NH, N2), N2),                    # Linear(231, 1024)
        "f1_b": u(ks[5], (NH,), N2),
        "f2_w": u(ks[6], (1, NH), NH),                     # Linear(1024, 1)
        "f2_b": u(ks[7], (1,), NH),
    }


# ---------------------------------------------------------------------------
# Pure-JAX reference (full f32 precision) for correctness check
# ---------------------------------------------------------------------------
def reference_forward(params, x):
    dn = ("NCHW", "OIHW", "NCHW")
    y = jax.lax.conv_general_dilated(
        x, params["c1_w"], (2, 2), "VALID", dimension_numbers=dn,
        precision=jax.lax.Precision.HIGHEST)
    y = jax.nn.relu(y + params["c1_b"][None, :, None, None])
    y = jax.lax.conv_general_dilated(
        y, params["c2_w"], (2, 2), "VALID", dimension_numbers=dn,
        precision=jax.lax.Precision.HIGHEST)
    y = jax.nn.relu(y + params["c2_b"][None, :, None, None])
    y = y.reshape(y.shape[0], -1)
    y = jax.nn.relu(
        jnp.dot(y, params["f1_w"].T, precision=jax.lax.Precision.HIGHEST)
        + params["f1_b"])
    y = jnp.dot(y, params["f2_w"].T, precision=jax.lax.Precision.HIGHEST) + params["f2_b"]
    return y


if __name__ == "__main__":
    key = jax.random.PRNGKey(0)
    kp, kx = jax.random.split(key)
    params = init_params(kp)
    prepped = prepare_params(params)      # one-time weight restructuring

    # The module architecture pins spatial dims to (128, 16); keep batch small.
    x = jax.random.normal(kx, (2, 1, H, W), jnp.float32)

    out = discriminator_forward(prepped, x)
    out = jax.block_until_ready(out)

    ref = reference_forward(params, x)
    assert out.shape == (2, 1), out.shape
    # Kernel uses bf16 storage + bf16 MXU passes (f32 accumulate) vs the full-f32
    # reference, so compare with a correspondingly loosened tolerance.
    assert jnp.allclose(out, ref, rtol=2e-2, atol=2e-2), (out, ref)

    print("KERNEL_OK")
</pallas_src>

<mosaic_0001>
module attributes {stable_mosaic.version = 11 : i64} {
  func.func @_disc_kernel(%arg0: i32, %arg1: memref<2x2048xbf16, #tpu.memory_space<vmem>>, %arg2: memref<2048x128xbf16, #tpu.memory_space<vmem>>, %arg3: memref<1x128xf32, #tpu.memory_space<vmem>>, %arg4: memref<128x256xbf16, #tpu.memory_space<vmem>>, %arg5: memref<1x256xf32, #tpu.memory_space<vmem>>, %arg6: memref<256x1024xbf16, #tpu.memory_space<vmem>>, %arg7: memref<1x1024xf32, #tpu.memory_space<vmem>>, %arg8: memref<1x1024xbf16, #tpu.memory_space<vmem>>, %arg9: memref<1xf32, #tpu.memory_space<smem>>, %arg10: memref<1x2xf32, #tpu.memory_space<vmem>>) attributes {dimension_semantics = [#tpu.dimension_semantics<parallel>], iteration_bounds = array<i64: 1>, scalar_prefetch = 0 : i64, scratch_operands = 0 : i64, tpu.core_type = #tpu.core_type<tc>, window_params = [{transform_indices = @transform_0, window_bounds = array<i64: 2, 2048>}, {pipeline_mode = #tpu.pipeline_mode<synchronous>, transform_indices = @transform_1, window_bounds = array<i64: 2048, 128>}, {pipeline_mode = #tpu.pipeline_mode<synchronous>, transform_indices = @transform_2, window_bounds = array<i64: 1, 128>}, {pipeline_mode = #tpu.pipeline_mode<synchronous>, transform_indices = @transform_3, window_bounds = array<i64: 128, 256>}, {pipeline_mode = #tpu.pipeline_mode<synchronous>, transform_indices = @transform_4, window_bounds = array<i64: 1, 256>}, {pipeline_mode = #tpu.pipeline_mode<synchronous>, transform_indices = @transform_5, window_bounds = array<i64: 256, 1024>}, {pipeline_mode = #tpu.pipeline_mode<synchronous>, transform_indices = @transform_6, window_bounds = array<i64: 1, 1024>}, {pipeline_mode = #tpu.pipeline_mode<synchronous>, transform_indices = @transform_7, window_bounds = array<i64: 1, 1024>}, {transform_indices = @transform_8, window_bounds = array<i64: 1>}, {transform_indices = @transform_9, window_bounds = array<i64: 1, 2>}]} {
    %c0 = arith.constant 0 : index
    %c0_0 = arith.constant 0 : index
    %0 = vector.load %arg1[%c0, %c0_0] : memref<2x2048xbf16, #tpu.memory_space<vmem>>, vector<2x2048xbf16>
    %c0_1 = arith.constant 0 : index
    %c0_2 = arith.constant 0 : index
    %1 = vector.load %arg2[%c0_1, %c0_2] : memref<2048x128xbf16, #tpu.memory_space<vmem>>, vector<2048x128xbf16>
    %cst = arith.constant dense<0.000000e+00> : vector<2x128xf32>
    %2 = tpu.matmul %0, %1, %cst {dimension_numbers = #tpu.dot_dimension_numbers<[1], [0], [0], [1], [0, 0, 1, 1], [], []>} : vector<2x2048xbf16>, vector<2048x128xbf16>, vector<2x128xf32> -> vector<2x128xf32>
    %c0_3 = arith.constant 0 : index
    %c0_4 = arith.constant 0 : index
    %3 = vector.load %arg3[%c0_3, %c0_4] : memref<1x128xf32, #tpu.memory_space<vmem>>, vector<1x128xf32>
    %4 = vector.broadcast %3 : vector<1x128xf32> to vector<2x128xf32>
    %5 = arith.addf %2, %4 : vector<2x128xf32>
    %cst_5 = arith.constant 0.000000e+00 : f32
    %6 = vector.broadcast %cst_5 : f32 to vector<2x128xf32>
    %7 = arith.maximumf %5, %6 : vector<2x128xf32>
    %8 = arith.truncf %7 : vector<2x128xf32> to vector<2x128xbf16>
    %c0_6 = arith.constant 0 : index
    %c0_7 = arith.constant 0 : index
    %9 = vector.load %arg4[%c0_6, %c0_7] : memref<128x256xbf16, #tpu.memory_space<vmem>>, vector<128x256xbf16>
    %cst_8 = arith.constant dense<0.000000e+00> : vector<2x256xf32>
    %10 = tpu.matmul %8, %9, %cst_8 {dimension_numbers = #tpu.dot_dimension_numbers<[1], [0], [0], [1], [0, 0, 1, 1], [], []>} : vector<2x128xbf16>, vector<128x256xbf16>, vector<2x256xf32> -> vector<2x256xf32>
    %c0_9 = arith.constant 0 : index
    %c0_10 = arith.constant 0 : index
    %11 = vector.load %arg5[%c0_9, %c0_10] : memref<1x256xf32, #tpu.memory_space<vmem>>, vector<1x256xf32>
    %12 = vector.broadcast %11 : vector<1x256xf32> to vector<2x256xf32>
    %13 = arith.addf %10, %12 : vector<2x256xf32>
    %cst_11 = arith.constant 0.000000e+00 : f32
    %14 = vector.broadcast %cst_11 : f32 to vector<2x256xf32>
    %15 = arith.maximumf %13, %14 : vector<2x256xf32>
    %16 = arith.truncf %15 : vector<2x256xf32> to vector<2x256xbf16>
    %c0_12 = arith.constant 0 : index
    %c0_13 = arith.constant 0 : index
    %17 = vector.load %arg6[%c0_12, %c0_13] : memref<256x1024xbf16, #tpu.memory_space<vmem>>, vector<256x1024xbf16>
    %cst_14 = arith.constant dense<0.000000e+00> : vector<2x1024xf32>
    %18 = tpu.matmul %16, %17, %cst_14 {dimension_numbers = #tpu.dot_dimension_numbers<[1], [0], [0], [1], [0, 0, 1, 1], [], []>} : vector<2x256xbf16>, vector<256x1024xbf16>, vector<2x1024xf32> -> vector<2x1024xf32>
    %c0_15 = arith.constant 0 : index
    %c0_16 = arith.constant 0 : index
    %19 = vector.load %arg7[%c0_15, %c0_16] : memref<1x1024xf32, #tpu.memory_space<vmem>>, vector<1x1024xf32>
    %20 = vector.broadcast %19 : vector<1x1024xf32> to vector<2x1024xf32>
    %21 = arith.addf %18, %20 : vector<2x1024xf32>
    %cst_17 = arith.constant 0.000000e+00 : f32
    %22 = vector.broadcast %cst_17 : f32 to vector<2x1024xf32>
    %23 = arith.maximumf %21, %22 : vector<2x1024xf32>
    %c0_18 = arith.constant 0 : index
    %c0_19 = arith.constant 0 : index
    %24 = vector.load %arg8[%c0_18, %c0_19] : memref<1x1024xbf16, #tpu.memory_space<vmem>>, vector<1x1024xbf16>
    %25 = arith.extf %24 : vector<1x1024xbf16> to vector<1x1024xf32>
    %26 = vector.broadcast %25 : vector<1x1024xf32> to vector<2x1024xf32>
    %27 = arith.mulf %23, %26 : vector<2x1024xf32>
    %cst_20 = arith.constant dense<0.000000e+00> : vector<2xf32>
    %28 = vector.multi_reduction <add>, %27, %cst_20 [1] : vector<2x1024xf32> to vector<2xf32>
    %c0_21 = arith.constant 0 : index
    %29 = memref.load %arg9[%c0_21] : memref<1xf32, #tpu.memory_space<smem>>
    %30 = vector.broadcast %29 : f32 to vector<2xf32>
    %31 = arith.addf %28, %30 : vector<2xf32>
    %c0_22 = arith.constant 0 : index
    %c0_23 = arith.constant 0 : index
    %32 = vector.load %arg10[%c0_22, %c0_23] : memref<1x2xf32, #tpu.memory_space<vmem>>, vector<1x2xf32>
    %33 = vector.shape_cast %32 : vector<1x2xf32> to vector<2xf32>
    %34 = vector.shape_cast %31 : vector<2xf32> to vector<1x2xf32>
    tpu.vector_store %arg10[%c0_22, %c0_23], %34 {strides = array<i32>} : memref<1x2xf32, #tpu.memory_space<vmem>>, vector<1x2xf32>,
    return
  }
  func.func @transform_0(%arg0: i32) -> (i32, i32) {
    %c0_i32 = arith.constant 0 : i32
    %c0_i32_0 = arith.constant 0 : i32
    return %arg0, %c0_i32 : i32, i32
  }
  func.func @transform_1(%arg0: i32) -> (i32, i32) {
    %c0_i32 = arith.constant 0 : i32
    %c0_i32_0 = arith.constant 0 : i32
    %c0_i32_1 = arith.constant 0 : i32
    return %c0_i32, %c0_i32_0 : i32, i32
  }
  func.func @transform_2(%arg0: i32) -> (i32, i32) {
    %c0_i32 = arith.constant 0 : i32
    %c0_i32_0 = arith.constant 0 : i32
    %c0_i32_1 = arith.constant 0 : i32
    return %c0_i32, %c0_i32_0 : i32, i32
  }
  func.func @transform_3(%arg0: i32) -> (i32, i32) {
    %c0_i32 = arith.constant 0 : i32
    %c0_i32_0 = arith.constant 0 : i32
    %c0_i32_1 = arith.constant 0 : i32
    return %c0_i32, %c0_i32_0 : i32, i32
  }
  func.func @transform_4(%arg0: i32) -> (i32, i32) {
    %c0_i32 = arith.constant 0 : i32
    %c0_i32_0 = arith.constant 0 : i32
    %c0_i32_1 = arith.constant 0 : i32
    return %c0_i32, %c0_i32_0 : i32, i32
  }
  func.func @transform_5(%arg0: i32) -> (i32, i32) {
    %c0_i32 = arith.constant 0 : i32
    %c0_i32_0 = arith.constant 0 : i32
    %c0_i32_1 = arith.constant 0 : i32
    return %c0_i32, %c0_i32_0 : i32, i32
  }
  func.func @transform_6(%arg0: i32) -> (i32, i32) {
    %c0_i32 = arith.constant 0 : i32
    %c0_i32_0 = arith.constant 0 : i32
    %c0_i32_1 = arith.constant 0 : i32
    return %c0_i32, %c0_i32_0 : i32, i32
  }
  func.func @transform_7(%arg0: i32) -> (i32, i32) {
    %c0_i32 = arith.constant 0 : i32
    %c0_i32_0 = arith.constant 0 : i32
    %c0_i32_1 = arith.constant 0 : i32
    return %c0_i32, %c0_i32_0 : i32, i32
  }
  func.func @transform_8(%arg0: i32) -> i32 {
    %c0_i32 = arith.constant 0 : i32
    %c0_i32_0 = arith.constant 0 : i32
    return %c0_i32 : i32
  }
  func.func @transform_9(%arg0: i32) -> (i32, i32) {
    %c0_i32 = arith.constant 0 : i32
    %c0_i32_0 = arith.constant 0 : i32
    return %arg0, %c0_i32 : i32, i32
  }
}

</mosaic_0001>

<llo_original>
// kernel: tpu_custom_call.1
$region0: #{tpu_custom_call.1}
  #allocation0 [shape = 'u32[]', space=smem, size = 0x4, offset = 0x4, fixed_abs, tag = 'smem constant byte address 0x4 - core index']
  #allocation1 [shape = 'u32[72,128]{1,0:T(1,128)}', space=vmem, size = 0x9000, scoped, tag = 'internal scratch']
  #allocation2 [shape = 'f32[1]{0:T(128)S(6)}', space=smem, size = 0x200, scoped, tag = 'scoped memory for tpu_custom_call.1']
  %s0 = inlined_call_operand.hbm [shape: bf16[2,2048], index: 0, kind: input, shape index: {}]
  %s1 = inlined_call_operand.hbm [shape: bf16[2048,128], index: 1, kind: input, shape index: {}]
  %s2 = inlined_call_operand.hbm [shape: f32[1,128], index: 2, kind: input, shape index: {}]
  %s3 = inlined_call_operand.hbm [shape: bf16[128,256], index: 3, kind: input, shape index: {}]
  %s4 = inlined_call_operand.hbm [shape: f32[1,256], index: 4, kind: input, shape index: {}]
  %s5 = inlined_call_operand.hbm [shape: bf16[256,1024], index: 5, kind: input, shape index: {}]
  %s6 = inlined_call_operand.hbm [shape: f32[1,1024], index: 6, kind: input, shape index: {}]
  %s7 = inlined_call_operand.vmem [shape: bf16[1,1024], index: 7, kind: input, shape index: {}]
  %s8 = inlined_call_operand.<no memory space> [shape: f32[1], index: 8, kind: input, shape index: {}]
  %s9 = inlined_call_operand.hbm [shape: f32[1,2], index: 9, kind: output, shape index: {}]
  %s10 = sld [smem:[#allocation0]]
  $region74: #{tpu_custom_call.1} parent=0
    _
  %s12 = ssub.s32 1, %s10
  %s13 = scalar_select 0, %s12, %s10
  %14 = sst [smem:[#allocation2]] %s8
  $region1: #{tpu_custom_call.1} parent=0
    #allocation3 [shape = 'u8[8192]{0}', space=vmem, size = 0x2000, scoped, tag = 'input window, operand 0, single buffered']
    #allocation4 [shape = 's32[1]{0}', space=sflag, size = 0x4, scoped, tag = 'scoped memory for tpu_custom_call.1']
    #allocation5 [shape = 's32[1]{0}', space=sflag, size = 0x4, scoped, tag = 'scoped memory for tpu_custom_call.1']
    #allocation6 [shape = 'u8[524288]{0}', space=vmem, size = 0x80000, scoped, tag = 'input window, operand 1, single buffered']
    #allocation7 [shape = 's32[1]{0}', space=sflag, size = 0x4, scoped, tag = 'scoped memory for tpu_custom_call.1']
    #allocation8 [shape = 'u8[512]{0}', space=vmem, size = 0x400, scoped, tag = 'input window, operand 2, single buffered']
    #allocation9 [shape = 'u8[65536]{0}', space=vmem, size = 0x10000, scoped, tag = 'input window, operand 3, single buffered']
    #allocation10 [shape = 's32[1]{0}', space=sflag, size = 0x4, scoped, tag = 'scoped memory for tpu_custom_call.1']
    #allocation11 [shape = 'u8[1024]{0}', space=vmem, size = 0x400, scoped, tag = 'input window, operand 4, single buffered']
    #allocation12 [shape = 'u8[524288]{0}', space=vmem, size = 0x80000, scoped, tag = 'input window, operand 5, single buffered']
    #allocation13 [shape = 's32[1]{0}', space=sflag, size = 0x4, scoped, tag = 'scoped memory for tpu_custom_call.1']
    #allocation14 [shape = 'u8[4096]{0}', space=vmem, size = 0x1000, scoped, tag = 'input window, operand 6, single buffered']
    #allocation15 [shape = 'u8[512]{0}', space=vmem, size = 0x400, scoped, tag = 'output window, operand 0, single buffered']
    %15 = vsyncpa [#allocation4], 0
    %16 = vsyncpa [#allocation7], 0
    %17 = vsyncpa [#allocation10], 0
    %18 = vsyncpa [#allocation13], 0
    %19 = vsyncpa [#allocation5], 0
    // Predicated region
    $region2: #{tpu_custom_call.1} parent=1 // pred_check
      _
    $region3: #{tpu_custom_call.1} parent=1 // pred_check_branch
      %21 = sbr.rel (0) target = $region5
    $region4: #{tpu_custom_call.1} parent=1 // pred_region
      %23 = vsyncadd [#allocation4], 0
      %s25 = sshll.u32 %s0, 4
      %s26 = int_to_ptr.hbm [resolvable:$true] %s25
      %s27 = sshll.u32 [#allocation3], 4
      %s28 = int_to_ptr.vmem [resolvable:$true] %s27
      %30 = dma.hbm_to_vmem [thread:$0]  %s26, 256, %s28, [#allocation4]
    $region5: #{tpu_custom_call.1} parent=1 // pred_fallthru
      _
    // Predicated region
    $region6: #{tpu_custom_call.1} parent=1 // pred_check
      _
    $region7: #{tpu_custom_call.1} parent=1 // pred_check_branch
      %32 = sbr.rel (0) target = $region9
    $region8: #{tpu_custom_call.1} parent=1 // pred_region
      %34 = vsyncadd [#allocation7], 0
      %s35 = sshll.u32 %s1, 4
      %s36 = int_to_ptr.hbm [resolvable:$true] %s35
      %s37 = sshll.u32 [#allocation6], 4
      %s38 = int_to_ptr.vmem [resolvable:$true] %s37
      %43 = dma.hbm_to_vmem [thread:$0]  %s36, 16384, %s38, [#allocation7], 64, 64, 4
    $region9: #{tpu_custom_call.1} parent=1 // pred_fallthru
      _
    // Predicated region
    $region10: #{tpu_custom_call.1} parent=1 // pred_check
      _
    $region11: #{tpu_custom_call.1} parent=1 // pred_check_branch
      %45 = sbr.rel (0) target = $region13
    $region12: #{tpu_custom_call.1} parent=1 // pred_region
      %47 = vsyncadd [#allocation7], 0
      %s49 = sshll.u32 %s2, 4
      %s50 = int_to_ptr.hbm [resolvable:$true] %s49
      %s51 = sshll.u32 [#allocation8], 4
      %s52 = int_to_ptr.vmem [resolvable:$true] %s51
      %54 = dma.hbm_to_vmem [thread:$0]  %s50, 16, %s52, [#allocation7]
    $region13: #{tpu_custom_call.1} parent=1 // pred_fallthru
      _
    // Predicated region
    $region14: #{tpu_custom_call.1} parent=1 // pred_check
      _
    $region15: #{tpu_custom_call.1} parent=1 // pred_check_branch
      %56 = sbr.rel (0) target = $region17
    $region16: #{tpu_custom_call.1} parent=1 // pred_region
      %58 = vsyncadd [#allocation10], 0
      %s59 = sshll.u32 %s3, 4
      %s60 = int_to_ptr.hbm [resolvable:$true] %s59
      %s61 = sshll.u32 [#allocation9], 4
      %s62 = int_to_ptr.vmem [resolvable:$true] %s61
      %67 = dma.hbm_to_vmem [thread:$0]  %s60, 2048, %s62, [#allocation10], 128, 128, 8
    $region17: #{tpu_custom_call.1} parent=1 // pred_fallthru
      _
    // Predicated region
    $region18: #{tpu_custom_call.1} parent=1 // pred_check
      _
    $region19: #{tpu_custom_call.1} parent=1 // pred_check_branch
      %69 = sbr.rel (0) target = $region21
    $region20: #{tpu_custom_call.1} parent=1 // pred_region
      %71 = vsyncadd [#allocation10], 0
      %s73 = sshll.u32 %s4, 4
      %s74 = int_to_ptr.hbm [resolvable:$true] %s73
      %s75 = sshll.u32 [#allocation11], 4
      %s76 = int_to_ptr.vmem [resolvable:$true] %s75
      %78 = dma.hbm_to_vmem [thread:$0]  %s74, 32, %s76, [#allocation10]
    $region21: #{tpu_custom_call.1} parent=1 // pred_fallthru
      _
    // Predicated region
    $region22: #{tpu_custom_call.1} parent=1 // pred_check
      _
    $region23: #{tpu_custom_call.1} parent=1 // pred_check_branch
      %80 = sbr.rel (0) target = $region25
    $region24: #{tpu_custom_call.1} parent=1 // pred_region
      %82 = vsyncadd [#allocation13], 0
      %s83 = sshll.u32 %s5, 4
      %s84 = int_to_ptr.hbm [resolvable:$true] %s83
      %s85 = sshll.u32 [#allocation12], 4
      %s86 = int_to_ptr.vmem [resolvable:$true] %s85
      %91 = dma.hbm_to_vmem [thread:$0]  %s84, 16384, %s86, [#allocation13], 512, 512, 32
    $region25: #{tpu_custom_call.1} parent=1 // pred_fallthru
      _
    // Predicated region
    $region26: #{tpu_custom_call.1} parent=1 // pred_check
      _
    $region27: #{tpu_custom_call.1} parent=1 // pred_check_branch
      %93 = sbr.rel (0) target = $region29
    $region28: #{tpu_custom_call.1} parent=1 // pred_region
      %95 = vsyncadd [#allocation13], 0
      %s97 = sshll.u32 %s6, 4
      %s98 = int_to_ptr.hbm [resolvable:$true] %s97
      %s99 = sshll.u32 [#allocation14], 4
      %s100 = int_to_ptr.vmem [resolvable:$true] %s99
      %102 = dma.hbm_to_vmem [thread:$0]  %s98, 128, %s100, [#allocation13]
    $region29: #{tpu_custom_call.1} parent=1 // pred_fallthru
      _
    // Predicated region
    $region30: #{tpu_custom_call.1} parent=1 // pred_check
      _
    $region31: #{tpu_custom_call.1} parent=1 // pred_check_branch
      %104 = sbr.rel (0) target = $region33
    $region32: #{tpu_custom_call.1} parent=1 // pred_region
      _
    $region33: #{tpu_custom_call.1} parent=1 // pred_fallthru
      _
    // Predicated region
    $region34: #{tpu_custom_call.1} parent=1 // pred_check
      _
    $region35: #{tpu_custom_call.1} parent=1 // pred_check_branch
      %106 = sbr.rel (0) target = $region37
    $region36: #{tpu_custom_call.1} parent=1 // pred_region
      _
    $region37: #{tpu_custom_call.1} parent=1 // pred_fallthru
      _
    // Predicated region
    $region38: #{tpu_custom_call.1} parent=1 // pred_check
      _
    $region39: #{tpu_custom_call.1} parent=1 // pred_check_branch
      %108 = sbr.rel (0) target = $region41
    $region40: #{tpu_custom_call.1} parent=1 // pred_region
      %110 = dma.done [#allocation4], 256
    $region41: #{tpu_custom_call.1} parent=1 // pred_fallthru
      _
    // Predicated region
    $region42: #{tpu_custom_call.1} parent=1 // pred_check
      _
    $region43: #{tpu_custom_call.1} parent=1 // pred_check_branch
      %112 = sbr.rel (0) target = $region45
    $region44: #{tpu_custom_call.1} parent=1 // pred_region
      %114 = dma.done [#allocation7], 16384
    $region45: #{tpu_custom_call.1} parent=1 // pred_fallthru
      _
    // Predicated region
    $region46: #{tpu_custom_call.1} parent=1 // pred_check
      _
    $region47: #{tpu_custom_call.1} parent=1 // pred_check_branch
      %116 = sbr.rel (0) target = $region49
    $region48: #{tpu_custom_call.1} parent=1 // pred_region
      %118 = dma.done [#allocation7], 16
    $region49: #{tpu_custom_call.1} parent=1 // pred_fallthru
      _
    // Predicated region
    $region50: #{tpu_custom_call.1} parent=1 // pred_check
      _
    $region51: #{tpu_custom_call.1} parent=1 // pred_check_branch
      %120 = sbr.rel (0) target = $region53
    $region52: #{tpu_custom_call.1} parent=1 // pred_region
      %122 = dma.done [#allocation10], 2048
    $region53: #{tpu_custom_call.1} parent=1 // pred_fallthru
      _
    // Predicated region
    $region54: #{tpu_custom_call.1} parent=1 // pred_check
      _
    $region55: #{tpu_custom_call.1} parent=1 // pred_check_branch
      %124 = sbr.rel (0) target = $region57
    $region56: #{tpu_custom_call.1} parent=1 // pred_region
      %126 = dma.done [#allocation10], 32
    $region57: #{tpu_custom_call.1} parent=1 // pred_fallthru
      _
    // Predicated region
    $region58: #{tpu_custom_call.1} parent=1 // pred_check
      _
    $region59: #{tpu_custom_call.1} parent=1 // pred_check_branch
      %128 = sbr.rel (0) target = $region61
    $region60: #{tpu_custom_call.1} parent=1 // pred_region
      %130 = dma.done [#allocation13], 16384
    $region61: #{tpu_custom_call.1} parent=1 // pred_fallthru
      _
    // Predicated region
    $region62: #{tpu_custom_call.1} parent=1 // pred_check
      _
    $region63: #{tpu_custom_call.1} parent=1 // pred_check_branch
      %132 = sbr.rel (0) target = $region65
    $region64: #{tpu_custom_call.1} parent=1 // pred_region
      %134 = dma.done [#allocation13], 128
    $region65: #{tpu_custom_call.1} parent=1 // pred_fallthru
      _
    %v135 = vld [vmem:[#allocation3] sm:$0xff]
    %v136 = vld [vmem:[#allocation3 + $0x8] sm:$0xff]
    %v137 = vld [vmem:[#allocation6] sm:$0xf]
    %v138 = vld [vmem:[#allocation6 + $0x4] sm:$0xf]
    %v139 = vld [vmem:[#allocation6 + $0x8] sm:$0xf]
    %v140 = vld [vmem:[#allocation6 + $0xc] sm:$0xf]
    %v141 = vld [vmem:[#allocation6 + $0x10] sm:$0xf]
    %v142 = vld [vmem:[#allocation6 + $0x14] sm:$0xf]
    %v143 = vld [vmem:[#allocation6 + $0x18] sm:$0xf]
    %v144 = vld [vmem:[#allocation6 + $0x1c] sm:$0xf]
    %v145 = vld [vmem:[#allocation6 + $0x20] sm:$0xf]
    %v146 = vld [vmem:[#allocation6 + $0x24] sm:$0xf]
    %v147 = vld [vmem:[#allocation6 + $0x28] sm:$0xf]
    %v148 = vld [vmem:[#allocation6 + $0x2c] sm:$0xf]
    %v149 = vld [vmem:[#allocation6 + $0x30] sm:$0xf]
    %v150 = vld [vmem:[#allocation6 + $0x34] sm:$0xf]
    %v151 = vld [vmem:[#allocation6 + $0x38] sm:$0xf]
    %v152 = vld [vmem:[#allocation6 + $0x3c] sm:$0xf]
    %v153 = vld [vmem:[#allocation6 + $0x40] sm:$0xf]
    %v154 = vld [vmem:[#allocation6 + $0x44] sm:$0xf]
    %v155 = vld [vmem:[#allocation6 + $0x48] sm:$0xf]
    %v156 = vld [vmem:[#allocation6 + $0x4c] sm:$0xf]
    %v157 = vld [vmem:[#allocation6 + $0x50] sm:$0xf]
    %v158 = vld [vmem:[#allocation6 + $0x54] sm:$0xf]
    %v159 = vld [vmem:[#allocation6 + $0x58] sm:$0xf]
    %v160 = vld [vmem:[#allocation6 + $0x5c] sm:$0xf]
    %v161 = vld [vmem:[#allocation6 + $0x60] sm:$0xf]
    %v162 = vld [vmem:[#allocation6 + $0x64] sm:$0xf]
    %v163 = vld [vmem:[#allocation6 + $0x68] sm:$0xf]
    %v164 = vld [vmem:[#allocation6 + $0x6c] sm:$0xf]
    %v165 = vld [vmem:[#allocation6 + $0x70] sm:$0xf]
    %v166 = vld [vmem:[#allocation6 + $0x74] sm:$0xf]
    %v167 = vld [vmem:[#allocation6 + $0x78] sm:$0xf]
    %v168 = vld [vmem:[#allocation6 + $0x7c] sm:$0xf]
    %v169 = vld [vmem:[#allocation6 + $0x80] sm:$0xf]
    %v170 = vld [vmem:[#allocation6 + $0x84] sm:$0xf]
    %v171 = vld [vmem:[#allocation6 + $0x88] sm:$0xf]
    %v172 = vld [vmem:[#allocation6 + $0x8c] sm:$0xf]
    %v173 = vld [vmem:[#allocation6 + $0x90] sm:$0xf]
    %v174 = vld [vmem:[#allocation6 + $0x94] sm:$0xf]
    %v175 = vld [vmem:[#allocation6 + $0x98] sm:$0xf]
    %v176 = vld [vmem:[#allocation6 + $0x9c] sm:$0xf]
    %v177 = vld [vmem:[#allocation6 + $0xa0] sm:$0xf]
    %v178 = vld [vmem:[#allocation6 + $0xa4] sm:$0xf]
    %v179 = vld [vmem:[#allocation6 + $0xa8] sm:$0xf]
    %v180 = vld [vmem:[#allocation6 + $0xac] sm:$0xf]
    %v181 = vld [vmem:[#allocation6 + $0xb0] sm:$0xf]
    %v182 = vld [vmem:[#allocation6 + $0xb4] sm:$0xf]
    %v183 = vld [vmem:[#allocation6 + $0xb8] sm:$0xf]
    %v184 = vld [vmem:[#allocation6 + $0xbc] sm:$0xf]
    %v185 = vld [vmem:[#allocation6 + $0xc0] sm:$0xf]
    %v186 = vld [vmem:[#allocation6 + $0xc4] sm:$0xf]
    %v187 = vld [vmem:[#allocation6 + $0xc8] sm:$0xf]
    %v188 = vld [vmem:[#allocation6 + $0xcc] sm:$0xf]
    %v189 = vld [vmem:[#allocation6 + $0xd0] sm:$0xf]
    %v190 = vld [vmem:[#allocation6 + $0xd4] sm:$0xf]
    %v191 = vld [vmem:[#allocation6 + $0xd8] sm:$0xf]
    %v192 = vld [vmem:[#allocation6 + $0xdc] sm:$0xf]
    %v193 = vld [vmem:[#allocation6 + $0xe0] sm:$0xf]
    %v194 = vld [vmem:[#allocation6 + $0xe4] sm:$0xf]
    %v195 = vld [vmem:[#allocation6 + $0xe8] sm:$0xf]
    %v196 = vld [vmem:[#allocation6 + $0xec] sm:$0xf]
    %v197 = vld [vmem:[#allocation6 + $0xf0] sm:$0xf]
    %v198 = vld [vmem:[#allocation6 + $0xf4] sm:$0xf]
    %v199 = vld [vmem:[#allocation6 + $0xf8] sm:$0xf]
    %v200 = vld [vmem:[#allocation6 + $0xfc] sm:$0xf]
    %v201 = vld [vmem:[#allocation6 + $0x100] sm:$0xf]
    %v202 = vld [vmem:[#allocation6 + $0x104] sm:$0xf]
    %v203 = vld [vmem:[#allocation6 + $0x108] sm:$0xf]
    %v204 = vld [vmem:[#allocation6 + $0x10c] sm:$0xf]
    %v205 = vld [vmem:[#allocation6 + $0x110] sm:$0xf]
    %v206 = vld [vmem:[#allocation6 + $0x114] sm:$0xf]
    %v207 = vld [vmem:[#allocation6 + $0x118] sm:$0xf]
    %v208 = vld [vmem:[#allocation6 + $0x11c] sm:$0xf]
    %v209 = vld [vmem:[#allocation6 + $0x120] sm:$0xf]
    %v210 = vld [vmem:[#allocation6 + $0x124] sm:$0xf]
    %v211 = vld [vmem:[#allocation6 + $0x128] sm:$0xf]
    %v212 = vld [vmem:[#allocation6 + $0x12c] sm:$0xf]
    %v213 = vld [vmem:[#allocation6 + $0x130] sm:$0xf]
    %v214 = vld [vmem:[#allocation6 + $0x134] sm:$0xf]
    %v215 = vld [vmem:[#allocation6 + $0x138] sm:$0xf]
    %v216 = vld [vmem:[#allocation6 + $0x13c] sm:$0xf]
    %v217 = vld [vmem:[#allocation6 + $0x140] sm:$0xf]
    %v218 = vld [vmem:[#allocation6 + $0x144] sm:$0xf]
    %v219 = vld [vmem:[#allocation6 + $0x148] sm:$0xf]
    %v220 = vld [vmem:[#allocation6 + $0x14c] sm:$0xf]
    %v221 = vld [vmem:[#allocation6 + $0x150] sm:$0xf]
    %v222 = vld [vmem:[#allocation6 + $0x154] sm:$0xf]
    %v223 = vld [vmem:[#allocation6 + $0x158] sm:$0xf]
    %v224 = vld [vmem:[#allocation6 + $0x15c] sm:$0xf]
    %v225 = vld [vmem:[#allocation6 + $0x160] sm:$0xf]
    %v226 = vld [vmem:[#allocation6 + $0x164] sm:$0xf]
    %v227 = vld [vmem:[#allocation6 + $0x168] sm:$0xf]
    %v228 = vld [vmem:[#allocation6 + $0x16c] sm:$0xf]
    %v229 = vld [vmem:[#allocation6 + $0x170] sm:$0xf]
    %v230 = vld [vmem:[#allocation6 + $0x174] sm:$0xf]
    %v231 = vld [vmem:[#allocation6 + $0x178] sm:$0xf]
    %v232 = vld [vmem:[#allocation6 + $0x17c] sm:$0xf]
    %v233 = vld [vmem:[#allocation6 + $0x180] sm:$0xf]
    %v234 = vld [vmem:[#allocation6 + $0x184] sm:$0xf]
    %v235 = vld [vmem:[#allocation6 + $0x188] sm:$0xf]
    %v236 = vld [vmem:[#allocation6 + $0x18c] sm:$0xf]
    %v237 = vld [vmem:[#allocation6 + $0x190] sm:$0xf]
    %v238 = vld [vmem:[#allocation6 + $0x194] sm:$0xf]
    %v239 = vld [vmem:[#allocation6 + $0x198] sm:$0xf]
    %v240 = vld [vmem:[#allocation6 + $0x19c] sm:$0xf]
    %v241 = vld [vmem:[#allocation6 + $0x1a0] sm:$0xf]
    %v242 = vld [vmem:[#allocation6 + $0x1a4] sm:$0xf]
    %v243 = vld [vmem:[#allocation6 + $0x1a8] sm:$0xf]
    %v244 = vld [vmem:[#allocation6 + $0x1ac] sm:$0xf]
    %v245 = vld [vmem:[#allocation6 + $0x1b0] sm:$0xf]
    %v246 = vld [vmem:[#allocation6 + $0x1b4] sm:$0xf]
    %v247 = vld [vmem:[#allocation6 + $0x1b8] sm:$0xf]
    %v248 = vld [vmem:[#allocation6 + $0x1bc] sm:$0xf]
    %v249 = vld [vmem:[#allocation6 + $0x1c0] sm:$0xf]
    %v250 = vld [vmem:[#allocation6 + $0x1c4] sm:$0xf]
    %v251 = vld [vmem:[#allocation6 + $0x1c8] sm:$0xf]
    %v252 = vld [vmem:[#allocation6 + $0x1cc] sm:$0xf]
    %v253 = vld [vmem:[#allocation6 + $0x1d0] sm:$0xf]
    %v254 = vld [vmem:[#allocation6 + $0x1d4] sm:$0xf]
    %v255 = vld [vmem:[#allocation6 + $0x1d8] sm:$0xf]
    %v256 = vld [vmem:[#allocation6 + $0x1dc] sm:$0xf]
    %v257 = vld [vmem:[#allocation6 + $0x1e0] sm:$0xf]
    %v258 = vld [vmem:[#allocation6 + $0x1e4] sm:$0xf]
    %v259 = vld [vmem:[#allocation6 + $0x1e8] sm:$0xf]
    %v260 = vld [vmem:[#allocation6 + $0x1ec] sm:$0xf]
    %v261 = vld [vmem:[#allocation6 + $0x1f0] sm:$0xf]
    %v262 = vld [vmem:[#allocation6 + $0x1f4] sm:$0xf]
    %v263 = vld [vmem:[#allocation6 + $0x1f8] sm:$0xf]
    %v264 = vld [vmem:[#allocation6 + $0x1fc] sm:$0xf]
    %v265 = vld [vmem:[#allocation6 + $0x200] sm:$0xf]
    %v266 = vld [vmem:[#allocation6 + $0x204] sm:$0xf]
    %v267 = vld [vmem:[#allocation6 + $0x208] sm:$0xf]
    %v268 = vld [vmem:[#allocation6 + $0x20c] sm:$0xf]
    %v269 = vld [vmem:[#allocation6 + $0x210] sm:$0xf]
    %v270 = vld [vmem:[#allocation6 + $0x214] sm:$0xf]
    %v271 = vld [vmem:[#allocation6 + $0x218] sm:$0xf]
    %v272 = vld [vmem:[#allocation6 + $0x21c] sm:$0xf]
    %v273 = vld [vmem:[#allocation6 + $0x220] sm:$0xf]
    %v274 = vld [vmem:[#allocation6 + $0x224] sm:$0xf]
    %v275 = vld [vmem:[#allocation6 + $0x228] sm:$0xf]
    %v276 = vld [vmem:[#allocation6 + $0x22c] sm:$0xf]
    %v277 = vld [vmem:[#allocation6 + $0x230] sm:$0xf]
    %v278 = vld [vmem:[#allocation6 + $0x234] sm:$0xf]
    %v279 = vld [vmem:[#allocation6 + $0x238] sm:$0xf]
    %v280 = vld [vmem:[#allocation6 + $0x23c] sm:$0xf]
    %v281 = vld [vmem:[#allocation6 + $0x240] sm:$0xf]
    %v282 = vld [vmem:[#allocation6 + $0x244] sm:$0xf]
    %v283 = vld [vmem:[#allocation6 + $0x248] sm:$0xf]
    %v284 = vld [vmem:[#allocation6 + $0x24c] sm:$0xf]
    %v285 = vld [vmem:[#allocation6 + $0x250] sm:$0xf]
    %v286 = vld [vmem:[#allocation6 + $0x254] sm:$0xf]
    %v287 = vld [vmem:[#allocation6 + $0x258] sm:$0xf]
    %v288 = vld [vmem:[#allocation6 + $0x25c] sm:$0xf]
    %v289 = vld [vmem:[#allocation6 + $0x260] sm:$0xf]
    %v290 = vld [vmem:[#allocation6 + $0x264] sm:$0xf]
    %v291 = vld [vmem:[#allocation6 + $0x268] sm:$0xf]
    %v292 = vld [vmem:[#allocation6 + $0x26c] sm:$0xf]
    %v293 = vld [vmem:[#allocation6 + $0x270] sm:$0xf]
    %v294 = vld [vmem:[#allocation6 + $0x274] sm:$0xf]
    %v295 = vld [vmem:[#allocation6 + $0x278] sm:$0xf]
    %v296 = vld [vmem:[#allocation6 + $0x27c] sm:$0xf]
    %v297 = vld [vmem:[#allocation6 + $0x280] sm:$0xf]
    %v298 = vld [vmem:[#allocation6 + $0x284] sm:$0xf]
    %v299 = vld [vmem:[#allocation6 + $0x288] sm:$0xf]
    %v300 = vld [vmem:[#allocation6 + $0x28c] sm:$0xf]
    %v301 = vld [vmem:[#allocation6 + $0x290] sm:$0xf]
    %v302 = vld [vmem:[#allocation6 + $0x294] sm:$0xf]
    %v303 = vld [vmem:[#allocation6 + $0x298] sm:$0xf]
    %v304 = vld [vmem:[#allocation6 + $0x29c] sm:$0xf]
    %v305 = vld [vmem:[#allocation6 + $0x2a0] sm:$0xf]
    %v306 = vld [vmem:[#allocation6 + $0x2a4] sm:$0xf]
    %v307 = vld [vmem:[#allocation6 + $0x2a8] sm:$0xf]
    %v308 = vld [vmem:[#allocation6 + $0x2ac] sm:$0xf]
    %v309 = vld [vmem:[#allocation6 + $0x2b0] sm:$0xf]
    %v310 = vld [vmem:[#allocation6 + $0x2b4] sm:$0xf]
    %v311 = vld [vmem:[#allocation6 + $0x2b8] sm:$0xf]
    %v312 = vld [vmem:[#allocation6 + $0x2bc] sm:$0xf]
    %v313 = vld [vmem:[#allocation6 + $0x2c0] sm:$0xf]
    %v314 = vld [vmem:[#allocation6 + $0x2c4] sm:$0xf]
    %v315 = vld [vmem:[#allocation6 + $0x2c8] sm:$0xf]
    %v316 = vld [vmem:[#allocation6 + $0x2cc] sm:$0xf]
    %v317 = vld [vmem:[#allocation6 + $0x2d0] sm:$0xf]
    %v318 = vld [vmem:[#allocation6 + $0x2d4] sm:$0xf]
    %v319 = vld [vmem:[#allocation6 + $0x2d8] sm:$0xf]
    %v320 = vld [vmem:[#allocation6 + $0x2dc] sm:$0xf]
    %v321 = vld [vmem:[#allocation6 + $0x2e0] sm:$0xf]
    %v322 = vld [vmem:[#allocation6 + $0x2e4] sm:$0xf]
    %v323 = vld [vmem:[#allocation6 + $0x2e8] sm:$0xf]
    %v324 = vld [vmem:[#allocation6 + $0x2ec] sm:$0xf]
    %v325 = vld [vmem:[#allocation6 + $0x2f0] sm:$0xf]
    %v326 = vld [vmem:[#allocation6 + $0x2f4] sm:$0xf]
    %v327 = vld [vmem:[#allocation6 + $0x2f8] sm:$0xf]
    %v328 = vld [vmem:[#allocation6 + $0x2fc] sm:$0xf]
    %v329 = vld [vmem:[#allocation6 + $0x300] sm:$0xf]
    %v330 = vld [vmem:[#allocation6 + $0x304] sm:$0xf]
    %v331 = vld [vmem:[#allocation6 + $0x308] sm:$0xf]
    %v332 = vld [vmem:[#allocation6 + $0x30c] sm:$0xf]
    %v333 = vld [vmem:[#allocation6 + $0x310] sm:$0xf]
    %v334 = vld [vmem:[#allocation6 + $0x314] sm:$0xf]
    %v335 = vld [vmem:[#allocation6 + $0x318] sm:$0xf]
    %v336 = vld [vmem:[#allocation6 + $0x31c] sm:$0xf]
    %v337 = vld [vmem:[#allocation6 + $0x320] sm:$0xf]
    %v338 = vld [vmem:[#allocation6 + $0x324] sm:$0xf]
    %v339 = vld [vmem:[#allocation6 + $0x328] sm:$0xf]
    %v340 = vld [vmem:[#allocation6 + $0x32c] sm:$0xf]
    %v341 = vld [vmem:[#allocation6 + $0x330] sm:$0xf]
    %v342 = vld [vmem:[#allocation6 + $0x334] sm:$0xf]
    %v343 = vld [vmem:[#allocation6 + $0x338] sm:$0xf]
    %v344 = vld [vmem:[#allocation6 + $0x33c] sm:$0xf]
    %v345 = vld [vmem:[#allocation6 + $0x340] sm:$0xf]
    %v346 = vld [vmem:[#allocation6 + $0x344] sm:$0xf]
    %v347 = vld [vmem:[#allocation6 + $0x348] sm:$0xf]
    %v348 = vld [vmem:[#allocation6 + $0x34c] sm:$0xf]
    %v349 = vld [vmem:[#allocation6 + $0x350] sm:$0xf]
    %v350 = vld [vmem:[#allocation6 + $0x354] sm:$0xf]
    %v351 = vld [vmem:[#allocation6 + $0x358] sm:$0xf]
    %v352 = vld [vmem:[#allocation6 + $0x35c] sm:$0xf]
    %v353 = vld [vmem:[#allocation6 + $0x360] sm:$0xf]
    %v354 = vld [vmem:[#allocation6 + $0x364] sm:$0xf]
    %v355 = vld [vmem:[#allocation6 + $0x368] sm:$0xf]
    %v356 = vld [vmem:[#allocation6 + $0x36c] sm:$0xf]
    %v357 = vld [vmem:[#allocation6 + $0x370] sm:$0xf]
    %v358 = vld [vmem:[#allocation6 + $0x374] sm:$0xf]
    %v359 = vld [vmem:[#allocation6 + $0x378] sm:$0xf]
    %v360 = vld [vmem:[#allocation6 + $0x37c] sm:$0xf]
    %v361 = vld [vmem:[#allocation6 + $0x380] sm:$0xf]
    %v362 = vld [vmem:[#allocation6 + $0x384] sm:$0xf]
    %v363 = vld [vmem:[#allocation6 + $0x388] sm:$0xf]
    %v364 = vld [vmem:[#allocation6 + $0x38c] sm:$0xf]
    %v365 = vld [vmem:[#allocation6 + $0x390] sm:$0xf]
    %v366 = vld [vmem:[#allocation6 + $0x394] sm:$0xf]
    %v367 = vld [vmem:[#allocation6 + $0x398] sm:$0xf]
    %v368 = vld [vmem:[#allocation6 + $0x39c] sm:$0xf]
    %v369 = vld [vmem:[#allocation6 + $0x3a0] sm:$0xf]
    %v370 = vld [vmem:[#allocation6 + $0x3a4] sm:$0xf]
    %v371 = vld [vmem:[#allocation6 + $0x3a8] sm:$0xf]
    %v372 = vld [vmem:[#allocation6 + $0x3ac] sm:$0xf]
    %v373 = vld [vmem:[#allocation6 + $0x3b0] sm:$0xf]
    %v374 = vld [vmem:[#allocation6 + $0x3b4] sm:$0xf]
    %v375 = vld [vmem:[#allocation6 + $0x3b8] sm:$0xf]
    %v376 = vld [vmem:[#allocation6 + $0x3bc] sm:$0xf]
    %v377 = vld [vmem:[#allocation6 + $0x3c0] sm:$0xf]
    %v378 = vld [vmem:[#allocation6 + $0x3c4] sm:$0xf]
    %v379 = vld [vmem:[#allocation6 + $0x3c8] sm:$0xf]
    %v380 = vld [vmem:[#allocation6 + $0x3cc] sm:$0xf]
    %v381 = vld [vmem:[#allocation6 + $0x3d0] sm:$0xf]
    %v382 = vld [vmem:[#allocation6 + $0x3d4] sm:$0xf]
    %v383 = vld [vmem:[#allocation6 + $0x3d8] sm:$0xf]
    %v384 = vld [vmem:[#allocation6 + $0x3dc] sm:$0xf]
    %v385 = vld [vmem:[#allocation6 + $0x3e0] sm:$0xf]
    %v386 = vld [vmem:[#allocation6 + $0x3e4] sm:$0xf]
    %v387 = vld [vmem:[#allocation6 + $0x3e8] sm:$0xf]
    %v388 = vld [vmem:[#allocation6 + $0x3ec] sm:$0xf]
    %v389 = vld [vmem:[#allocation6 + $0x3f0] sm:$0xf]
    %v390 = vld [vmem:[#allocation6 + $0x3f4] sm:$0xf]
    %v391 = vld [vmem:[#allocation6 + $0x3f8] sm:$0xf]
    %v392 = vld [vmem:[#allocation6 + $0x3fc] sm:$0xf]
    %v393 = vld [vmem:[#allocation8] sm:$0x1]
    %v395 = vperm.slane %v393, 0
    %398 = vst [vmem:[#allocation1] ss:$9 sm:$0xff] %v135
    %v399 = vld [vmem:[#allocation1] sm:$0xff]
    %v400 = vld [vmem:[#allocation1 + $0x9] sm:$0xff]
    %v401 = vld [vmem:[#allocation1 + $0x12] sm:$0xff]
    %v402 = vld [vmem:[#allocation1 + $0x1b] sm:$0xff]
    %v403 = vld [vmem:[#allocation1 + $0x24] sm:$0xff]
    %v404 = vld [vmem:[#allocation1 + $0x2d] sm:$0xff]
    %v405 = vld [vmem:[#allocation1 + $0x36] sm:$0xff]
    %v406 = vld [vmem:[#allocation1 + $0x3f] sm:$0xff]
    %408 = vst [vmem:[#allocation1] ss:$9 sm:$0xff] %v136
    %v409 = vld [vmem:[#allocation1] sm:$0xff]
    %v410 = vld [vmem:[#allocation1 + $0x9] sm:$0xff]
    %v411 = vld [vmem:[#allocation1 + $0x12] sm:$0xff]
    %v412 = vld [vmem:[#allocation1 + $0x1b] sm:$0xff]
    %v413 = vld [vmem:[#allocation1 + $0x24] sm:$0xff]
    %v414 = vld [vmem:[#allocation1 + $0x2d] sm:$0xff]
    %v415 = vld [vmem:[#allocation1 + $0x36] sm:$0xff]
    %v416 = vld [vmem:[#allocation1 + $0x3f] sm:$0xff]
    %v689 = vunpack.c.l.b16 %v137
    %v690 = vunpack.c.l.b16 %v138
    %v691 = vunpack.c.l.b16 %v139
    %v692 = vunpack.c.l.b16 %v140
    %v693 = vunpack.c.l.b16 %v141
    %v694 = vunpack.c.l.b16 %v142
    %v695 = vunpack.c.l.b16 %v143
    %v696 = vunpack.c.l.b16 %v144
    %v697 = vunpack.c.l.b16 %v145
    %v698 = vunpack.c.l.b16 %v146
    %v699 = vunpack.c.l.b16 %v147
    %v700 = vunpack.c.l.b16 %v148
    %v701 = vunpack.c.l.b16 %v149
    %v702 = vunpack.c.l.b16 %v150
    %v703 = vunpack.c.l.b16 %v151
    %v704 = vunpack.c.l.b16 %v152
    %v705 = vunpack.c.l.b16 %v153
    %v706 = vunpack.c.l.b16 %v154
    %v707 = vunpack.c.l.b16 %v155
    %v708 = vunpack.c.l.b16 %v156
    %v709 = vunpack.c.l.b16 %v157
    %v710 = vunpack.c.l.b16 %v158
    %v711 = vunpack.c.l.b16 %v159
    %v712 = vunpack.c.l.b16 %v160
    %v713 = vunpack.c.l.b16 %v161
    %v714 = vunpack.c.l.b16 %v162
    %v715 = vunpack.c.l.b16 %v163
    %v716 = vunpack.c.l.b16 %v164
    %v717 = vunpack.c.l.b16 %v165
    %v718 = vunpack.c.l.b16 %v166
    %v719 = vunpack.c.l.b16 %v167
    %v720 = vunpack.c.l.b16 %v168
    %v721 = vunpack.c.l.b16 %v169
    %v722 = vunpack.c.l.b16 %v170
    %v723 = vunpack.c.l.b16 %v171
    %v724 = vunpack.c.l.b16 %v172
    %v725 = vunpack.c.l.b16 %v173
    %v726 = vunpack.c.l.b16 %v174
    %v727 = vunpack.c.l.b16 %v175
    %v728 = vunpack.c.l.b16 %v176
    %v729 = vunpack.c.l.b16 %v177
    %v730 = vunpack.c.l.b16 %v178
    %v731 = vunpack.c.l.b16 %v179
    %v732 = vunpack.c.l.b16 %v180
    %v733 = vunpack.c.l.b16 %v181
    %v734 = vunpack.c.l.b16 %v182
    %v735 = vunpack.c.l.b16 %v183
    %v736 = vunpack.c.l.b16 %v184
    %v737 = vunpack.c.l.b16 %v185
    %v738 = vunpack.c.l.b16 %v186
    %v739 = vunpack.c.l.b16 %v187
    %v740 = vunpack.c.l.b16 %v188
    %v741 = vunpack.c.l.b16 %v189
    %v742 = vunpack.c.l.b16 %v190
    %v743 = vunpack.c.l.b16 %v191
    %v744 = vunpack.c.l.b16 %v192
    %v745 = vunpack.c.l.b16 %v193
    %v746 = vunpack.c.l.b16 %v194
    %v747 = vunpack.c.l.b16 %v195
    %v748 = vunpack.c.l.b16 %v196
    %v749 = vunpack.c.l.b16 %v197
    %v750 = vunpack.c.l.b16 %v198
    %v751 = vunpack.c.l.b16 %v199
    %v752 = vunpack.c.l.b16 %v200
    %v753 = vunpack.c.l.b16 %v201
    %v754 = vunpack.c.l.b16 %v202
    %v755 = vunpack.c.l.b16 %v203
    %v756 = vunpack.c.l.b16 %v204
    %v757 = vunpack.c.l.b16 %v205
    %v758 = vunpack.c.l.b16 %v206
    %v759 = vunpack.c.l.b16 %v207
    %v760 = vunpack.c.l.b16 %v208
    %v761 = vunpack.c.l.b16 %v209
    %v762 = vunpack.c.l.b16 %v210
    %v763 = vunpack.c.l.b16 %v211
    %v764 = vunpack.c.l.b16 %v212
    %v765 = vunpack.c.l.b16 %v213
    %v766 = vunpack.c.l.b16 %v214
    %v767 = vunpack.c.l.b16 %v215
    %v768 = vunpack.c.l.b16 %v216
    %v769 = vunpack.c.l.b16 %v217
    %v770 = vunpack.c.l.b16 %v218
    %v771 = vunpack.c.l.b16 %v219
    %v772 = vunpack.c.l.b16 %v220
    %v773 = vunpack.c.l.b16 %v221
    %v774 = vunpack.c.l.b16 %v222
    %v775 = vunpack.c.l.b16 %v223
    %v776 = vunpack.c.l.b16 %v224
    %v777 = vunpack.c.l.b16 %v225
    %v778 = vunpack.c.l.b16 %v226
    %v779 = vunpack.c.l.b16 %v227
    %v780 = vunpack.c.l.b16 %v228
    %v781 = vunpack.c.l.b16 %v229
    %v782 = vunpack.c.l.b16 %v230
    %v783 = vunpack.c.l.b16 %v231
    %v784 = vunpack.c.l.b16 %v232
    %v785 = vunpack.c.l.b16 %v233
    %v786 = vunpack.c.l.b16 %v234
    %v787 = vunpack.c.l.b16 %v235
    %v788 = vunpack.c.l.b16 %v236
    %v789 = vunpack.c.l.b16 %v237
    %v790 = vunpack.c.l.b16 %v238
    %v791 = vunpack.c.l.b16 %v239
    %v792 = vunpack.c.l.b16 %v240
    %v793 = vunpack.c.l.b16 %v241
    %v794 = vunpack.c.l.b16 %v242
    %v795 = vunpack.c.l.b16 %v243
    %v796 = vunpack.c.l.b16 %v244
    %v797 = vunpack.c.l.b16 %v245
    %v798 = vunpack.c.l.b16 %v246
    %v799 = vunpack.c.l.b16 %v247
    %v800 = vunpack.c.l.b16 %v248
    %v801 = vunpack.c.l.b16 %v249
    %v802 = vunpack.c.l.b16 %v250
    %v803 = vunpack.c.l.b16 %v251
    %v804 = vunpack.c.l.b16 %v252
    %v805 = vunpack.c.l.b16 %v253
    %v806 = vunpack.c.l.b16 %v254
    %v807 = vunpack.c.l.b16 %v255
    %v808 = vunpack.c.l.b16 %v256
    %v809 = vunpack.c.l.b16 %v257
    %v810 = vunpack.c.l.b16 %v258
    %v811 = vunpack.c.l.b16 %v259
    %v812 = vunpack.c.l.b16 %v260
    %v813 = vunpack.c.l.b16 %v261
    %v814 = vunpack.c.l.b16 %v262
    %v815 = vunpack.c.l.b16 %v263
    %v816 = vunpack.c.l.b16 %v264
    %v817 = vunpack.c.l.b16 %v265
    %v818 = vunpack.c.l.b16 %v266
    %v819 = vunpack.c.l.b16 %v267
    %v820 = vunpack.c.l.b16 %v268
    %v821 = vunpack.c.l.b16 %v269
    %v822 = vunpack.c.l.b16 %v270
    %v823 = vunpack.c.l.b16 %v271
    %v824 = vunpack.c.l.b16 %v272
    %v825 = vunpack.c.l.b16 %v273
    %v826 = vunpack.c.l.b16 %v274
    %v827 = vunpack.c.l.b16 %v275
    %v828 = vunpack.c.l.b16 %v276
    %v829 = vunpack.c.l.b16 %v277
    %v830 = vunpack.c.l.b16 %v278
    %v831 = vunpack.c.l.b16 %v279
    %v832 = vunpack.c.l.b16 %v280
    %v833 = vunpack.c.l.b16 %v281
    %v834 = vunpack.c.l.b16 %v282
    %v835 = vunpack.c.l.b16 %v283
    %v836 = vunpack.c.l.b16 %v284
    %v837 = vunpack.c.l.b16 %v285
    %v838 = vunpack.c.l.b16 %v286
    %v839 = vunpack.c.l.b16 %v287
    %v840 = vunpack.c.l.b16 %v288
    %v841 = vunpack.c.l.b16 %v289
    %v842 = vunpack.c.l.b16 %v290
    %v843 = vunpack.c.l.b16 %v291
    %v844 = vunpack.c.l.b16 %v292
    %v845 = vunpack.c.l.b16 %v293
    %v846 = vunpack.c.l.b16 %v294
    %v847 = vunpack.c.l.b16 %v295
    %v848 = vunpack.c.l.b16 %v296
    %v849 = vunpack.c.l.b16 %v297
    %v850 = vunpack.c.l.b16 %v298
    %v851 = vunpack.c.l.b16 %v299
    %v852 = vunpack.c.l.b16 %v300
    %v853 = vunpack.c.l.b16 %v301
    %v854 = vunpack.c.l.b16 %v302
    %v855 = vunpack.c.l.b16 %v303
    %v856 = vunpack.c.l.b16 %v304
    %v857 = vunpack.c.l.b16 %v305
    %v858 = vunpack.c.l.b16 %v306
    %v859 = vunpack.c.l.b16 %v307
    %v860 = vunpack.c.l.b16 %v308
    %v861 = vunpack.c.l.b16 %v309
    %v862 = vunpack.c.l.b16 %v310
    %v863 = vunpack.c.l.b16 %v311
    %v864 = vunpack.c.l.b16 %v312
    %v865 = vunpack.c.l.b16 %v313
    %v866 = vunpack.c.l.b16 %v314
    %v867 = vunpack.c.l.b16 %v315
    %v868 = vunpack.c.l.b16 %v316
    %v869 = vunpack.c.l.b16 %v317
    %v870 = vunpack.c.l.b16 %v318
    %v871 = vunpack.c.l.b16 %v319
    %v872 = vunpack.c.l.b16 %v320
    %v873 = vunpack.c.l.b16 %v321
    %v874 = vunpack.c.l.b16 %v322
    %v875 = vunpack.c.l.b16 %v323
    %v876 = vunpack.c.l.b16 %v324
    %v877 = vunpack.c.l.b16 %v325
    %v878 = vunpack.c.l.b16 %v326
    %v879 = vunpack.c.l.b16 %v327
    %v880 = vunpack.c.l.b16 %v328
    %v881 = vunpack.c.l.b16 %v329
    %v882 = vunpack.c.l.b16 %v330
    %v883 = vunpack.c.l.b16 %v331
    %v884 = vunpack.c.l.b16 %v332
    %v885 = vunpack.c.l.b16 %v333
    %v886 = vunpack.c.l.b16 %v334
    %v887 = vunpack.c.l.b16 %v335
    %v888 = vunpack.c.l.b16 %v336
    %v889 = vunpack.c.l.b16 %v337
    %v890 = vunpack.c.l.b16 %v338
    %v891 = vunpack.c.l.b16 %v339
    %v892 = vunpack.c.l.b16 %v340
    %v893 = vunpack.c.l.b16 %v341
    %v894 = vunpack.c.l.b16 %v342
    %v895 = vunpack.c.l.b16 %v343
    %v896 = vunpack.c.l.b16 %v344
    %v897 = vunpack.c.l.b16 %v345
    %v898 = vunpack.c.l.b16 %v346
    %v899 = vunpack.c.l.b16 %v347
    %v900 = vunpack.c.l.b16 %v348
    %v901 = vunpack.c.l.b16 %v349
    %v902 = vunpack.c.l.b16 %v350
    %v903 = vunpack.c.l.b16 %v351
    %v904 = vunpack.c.l.b16 %v352
    %v905 = vunpack.c.l.b16 %v353
    %v906 = vunpack.c.l.b16 %v354
    %v907 = vunpack.c.l.b16 %v355
    %v908 = vunpack.c.l.b16 %v356
    %v909 = vunpack.c.l.b16 %v357
    %v910 = vunpack.c.l.b16 %v358
    %v911 = vunpack.c.l.b16 %v359
    %v912 = vunpack.c.l.b16 %v360
    %v913 = vunpack.c.l.b16 %v361
    %v914 = vunpack.c.l.b16 %v362
    %v915 = vunpack.c.l.b16 %v363
    %v916 = vunpack.c.l.b16 %v364
    %v917 = vunpack.c.l.b16 %v365
    %v918 = vunpack.c.l.b16 %v366
    %v919 = vunpack.c.l.b16 %v367
    %v920 = vunpack.c.l.b16 %v368
    %v921 = vunpack.c.l.b16 %v369
    %v922 = vunpack.c.l.b16 %v370
    %v923 = vunpack.c.l.b16 %v371
    %v924 = vunpack.c.l.b16 %v372
    %v925 = vunpack.c.l.b16 %v373
    %v926 = vunpack.c.l.b16 %v374
    %v927 = vunpack.c.l.b16 %v375
    %v928 = vunpack.c.l.b16 %v376
    %v929 = vunpack.c.l.b16 %v377
    %v930 = vunpack.c.l.b16 %v378
    %v931 = vunpack.c.l.b16 %v379
    %v932 = vunpack.c.l.b16 %v380
    %v933 = vunpack.c.l.b16 %v381
    %v934 = vunpack.c.l.b16 %v382
    %v935 = vunpack.c.l.b16 %v383
    %v936 = vunpack.c.l.b16 %v384
    %v937 = vunpack.c.l.b16 %v385
    %v938 = vunpack.c.l.b16 %v386
    %v939 = vunpack.c.l.b16 %v387
    %v940 = vunpack.c.l.b16 %v388
    %v941 = vunpack.c.l.b16 %v389
    %v942 = vunpack.c.l.b16 %v390
    %v943 = vunpack.c.l.b16 %v391
    %v944 = vunpack.c.l.b16 %v392
    %v945 = vpack.c.b16 %v690, %v689
    %v946 = vpack.c.b16 %v692, %v691
    %v947 = vpack.c.b16 %v694, %v693
    %v948 = vpack.c.b16 %v696, %v695
    %v949 = vpack.c.b16 %v698, %v697
    %v950 = vpack.c.b16 %v700, %v699
    %v951 = vpack.c.b16 %v702, %v701
    %v952 = vpack.c.b16 %v704, %v703
    %v953 = vpack.c.b16 %v706, %v705
    %v954 = vpack.c.b16 %v708, %v707
    %v955 = vpack.c.b16 %v710, %v709
    %v956 = vpack.c.b16 %v712, %v711
    %v957 = vpack.c.b16 %v714, %v713
    %v958 = vpack.c.b16 %v716, %v715
    %v959 = vpack.c.b16 %v718, %v717
    %v960 = vpack.c.b16 %v720, %v719
    %v961 = vpack.c.b16 %v722, %v721
    %v962 = vpack.c.b16 %v724, %v723
    %v963 = vpack.c.b16 %v726, %v725
    %v964 = vpack.c.b16 %v728, %v727
    %v965 = vpack.c.b16 %v730, %v729
    %v966 = vpack.c.b16 %v732, %v731
    %v967 = vpack.c.b16 %v734, %v733
    %v968 = vpack.c.b16 %v736, %v735
    %v969 = vpack.c.b16 %v738, %v737
    %v970 = vpack.c.b16 %v740, %v739
    %v971 = vpack.c.b16 %v742, %v741
    %v972 = vpack.c.b16 %v744, %v743
    %v973 = vpack.c.b16 %v746, %v745
    %v974 = vpack.c.b16 %v748, %v747
    %v975 = vpack.c.b16 %v750, %v749
    %v976 = vpack.c.b16 %v752, %v751
    %v977 = vpack.c.b16 %v754, %v753
    %v978 = vpack.c.b16 %v756, %v755
    %v979 = vpack.c.b16 %v758, %v757
    %v980 = vpack.c.b16 %v760, %v759
    %v981 = vpack.c.b16 %v762, %v761
    %v982 = vpack.c.b16 %v764, %v763
    %v983 = vpack.c.b16 %v766, %v765
    %v984 = vpack.c.b16 %v768, %v767
    %v985 = vpack.c.b16 %v770, %v769
    %v986 = vpack.c.b16 %v772, %v771
    %v987 = vpack.c.b16 %v774, %v773
    %v988 = vpack.c.b16 %v776, %v775
    %v989 = vpack.c.b16 %v778, %v777
    %v990 = vpack.c.b16 %v780, %v779
    %v991 = vpack.c.b16 %v782, %v781
    %v992 = vpack.c.b16 %v784, %v783
    %v993 = vpack.c.b16 %v786, %v785
    %v994 = vpack.c.b16 %v788, %v787
    %v995 = vpack.c.b16 %v790, %v789
    %v996 = vpack.c.b16 %v792, %v791
    %v997 = vpack.c.b16 %v794, %v793
    %v998 = vpack.c.b16 %v796, %v795
    %v999 = vpack.c.b16 %v798, %v797
    %v1000 = vpack.c.b16 %v800, %v799
    %v1001 = vpack.c.b16 %v802, %v801
    %v1002 = vpack.c.b16 %v804, %v803
    %v1003 = vpack.c.b16 %v806, %v805
    %v1004 = vpack.c.b16 %v808, %v807
    %v1005 = vpack.c.b16 %v810, %v809
    %v1006 = vpack.c.b16 %v812, %v811
    %v1007 = vpack.c.b16 %v814, %v813
    %v1008 = vpack.c.b16 %v816, %v815
    %v1009 = vpack.c.b16 %v818, %v817
    %v1010 = vpack.c.b16 %v820, %v819
    %v1011 = vpack.c.b16 %v822, %v821
    %v1012 = vpack.c.b16 %v824, %v823
    %v1013 = vpack.c.b16 %v826, %v825
    %v1014 = vpack.c.b16 %v828, %v827
    %v1015 = vpack.c.b16 %v830, %v829
    %v1016 = vpack.c.b16 %v832, %v831
    %v1017 = vpack.c.b16 %v834, %v833
    %v1018 = vpack.c.b16 %v836, %v835
    %v1019 = vpack.c.b16 %v838, %v837
    %v1020 = vpack.c.b16 %v840, %v839
    %v1021 = vpack.c.b16 %v842, %v841
    %v1022 = vpack.c.b16 %v844, %v843
    %v1023 = vpack.c.b16 %v846, %v845
    %v1024 = vpack.c.b16 %v848, %v847
    %v1025 = vpack.c.b16 %v850, %v849
    %v1026 = vpack.c.b16 %v852, %v851
    %v1027 = vpack.c.b16 %v854, %v853
    %v1028 = vpack.c.b16 %v856, %v855
    %v1029 = vpack.c.b16 %v858, %v857
    %v1030 = vpack.c.b16 %v860, %v859
    %v1031 = vpack.c.b16 %v862, %v861
    %v1032 = vpack.c.b16 %v864, %v863
    %v1033 = vpack.c.b16 %v866, %v865
    %v1034 = vpack.c.b16 %v868, %v867
    %v1035 = vpack.c.b16 %v870, %v869
    %v1036 = vpack.c.b16 %v872, %v871
    %v1037 = vpack.c.b16 %v874, %v873
    %v1038 = vpack.c.b16 %v876, %v875
    %v1039 = vpack.c.b16 %v878, %v877
    %v1040 = vpack.c.b16 %v880, %v879
    %v1041 = vpack.c.b16 %v882, %v881
    %v1042 = vpack.c.b16 %v884, %v883
    %v1043 = vpack.c.b16 %v886, %v885
    %v1044 = vpack.c.b16 %v888, %v887
    %v1045 = vpack.c.b16 %v890, %v889
    %v1046 = vpack.c.b16 %v892, %v891
    %v1047 = vpack.c.b16 %v894, %v893
    %v1048 = vpack.c.b16 %v896, %v895
    %v1049 = vpack.c.b16 %v898, %v897
    %v1050 = vpack.c.b16 %v900, %v899
    %v1051 = vpack.c.b16 %v902, %v901
    %v1052 = vpack.c.b16 %v904, %v903
    %v1053 = vpack.c.b16 %v906, %v905
    %v1054 = vpack.c.b16 %v908, %v907
    %v1055 = vpack.c.b16 %v910, %v909
    %v1056 = vpack.c.b16 %v912, %v911
    %v1057 = vpack.c.b16 %v914, %v913
    %v1058 = vpack.c.b16 %v916, %v915
    %v1059 = vpack.c.b16 %v918, %v917
    %v1060 = vpack.c.b16 %v920, %v919
    %v1061 = vpack.c.b16 %v922, %v921
    %v1062 = vpack.c.b16 %v924, %v923
    %v1063 = vpack.c.b16 %v926, %v925
    %v1064 = vpack.c.b16 %v928, %v927
    %v1065 = vpack.c.b16 %v930, %v929
    %v1066 = vpack.c.b16 %v932, %v931
    %v1067 = vpack.c.b16 %v934, %v933
    %v1068 = vpack.c.b16 %v936, %v935
    %v1069 = vpack.c.b16 %v938, %v937
    %v1070 = vpack.c.b16 %v940, %v939
    %v1071 = vpack.c.b16 %v942, %v941
    %v1072 = vpack.c.b16 %v944, %v943
    %1201 = vmatpush.bf16.msra.mxu0 %v952
    %1202 = vmatpush.bf16.msra.mxu0 %v951
    %1203 = vmatpush.bf16.msra.mxu0 %v950
    %1204 = vmatpush.bf16.msra.mxu0 %v949
    %1205 = vmatpush.bf16.msra.mxu0 %v948
    %1206 = vmatpush.bf16.msra.mxu0 %v947
    %1207 = vmatpush.bf16.msra.mxu0 %v946
    %1208 = vmatpush.bf16.msra.mxu0 %v945
    %1209 = vmatmul.bf16.gmra.mxu0 %v399
    %v1210 = vpop.f32.mrf.mxu0
    %v1211 = vadd.f32 %v395, %v1210
    %v1212 = vpop.f32.mrf.mxu0
    %1213 = vdwg.mxu0
    %1214 = vmatpush.bf16.msra.mxu0 %v960
    %1215 = vmatpush.bf16.msra.mxu0 %v959
    %1216 = vmatpush.bf16.msra.mxu0 %v958
    %1217 = vmatpush.bf16.msra.mxu0 %v957
    %1218 = vmatpush.bf16.msra.mxu0 %v956
    %1219 = vmatpush.bf16.msra.mxu0 %v955
    %1220 = vmatpush.bf16.msra.mxu0 %v954
    %1221 = vmatpush.bf16.msra.mxu0 %v953
    %1222 = vmatmul.bf16.gmra.mxu0 %v400
    %v1223 = vpop.f32.mrf.mxu0
    %v1224 = vadd.f32 %v1211, %v1223
    %v1225 = vpop.f32.mrf.mxu0
    %1226 = vdwg.mxu0
    %1227 = vmatpush.bf16.msra.mxu0 %v968
    %1228 = vmatpush.bf16.msra.mxu0 %v967
    %1229 = vmatpush.bf16.msra.mxu0 %v966
    %1230 = vmatpush.bf16.msra.mxu0 %v965
    %1231 = vmatpush.bf16.msra.mxu0 %v964
    %1232 = vmatpush.bf16.msra.mxu0 %v963
    %1233 = vmatpush.bf16.msra.mxu0 %v962
    %1234 = vmatpush.bf16.msra.mxu0 %v961
    %1235 = vmatmul.bf16.gmra.mxu0 %v401
    %v1236 = vpop.f32.mrf.mxu0
    %v1237 = vadd.f32 %v1224, %v1236
    %v1238 = vpop.f32.mrf.mxu0
    %1239 = vdwg.mxu0
    %1240 = vmatpush.bf16.msra.mxu0 %v976
    %1241 = vmatpush.bf16.msra.mxu0 %v975
    %1242 = vmatpush.bf16.msra.mxu0 %v974
    %1243 = vmatpush.bf16.msra.mxu0 %v973
    %1244 = vmatpush.bf16.msra.mxu0 %v972
    %1245 = vmatpush.bf16.msra.mxu0 %v971
    %1246 = vmatpush.bf16.msra.mxu0 %v970
    %1247 = vmatpush.bf16.msra.mxu0 %v969
    %1248 = vmatmul.bf16.gmra.mxu0 %v402
    %v1249 = vpop.f32.mrf.mxu0
    %v1250 = vadd.f32 %v1237, %v1249
    %v1251 = vpop.f32.mrf.mxu0
    %1252 = vdwg.mxu0
    %1253 = vmatpush.bf16.msra.mxu0 %v984
    %1254 = vmatpush.bf16.msra.mxu0 %v983
    %1255 = vmatpush.bf16.msra.mxu0 %v982
    %1256 = vmatpush.bf16.msra.mxu0 %v981
    %1257 = vmatpush.bf16.msra.mxu0 %v980
    %1258 = vmatpush.bf16.msra.mxu0 %v979
    %1259 = vmatpush.bf16.msra.mxu0 %v978
    %1260 = vmatpush.bf16.msra.mxu0 %v977
    %1261 = vmatmul.bf16.gmra.mxu0 %v403
    %v1262 = vpop.f32.mrf.mxu0
    %v1263 = vadd.f32 %v1250, %v1262
    %v1264 = vpop.f32.mrf.mxu0
    %1265 = vdwg.mxu0
    %1266 = vmatpush.bf16.msra.mxu0 %v992
    %1267 = vmatpush.bf16.msra.mxu0 %v991
    %1268 = vmatpush.bf16.msra.mxu0 %v990
    %1269 = vmatpush.bf16.msra.mxu0 %v989
    %1270 = vmatpush.bf16.msra.mxu0 %v988
    %1271 = vmatpush.bf16.msra.mxu0 %v987
    %1272 = vmatpush.bf16.msra.mxu0 %v986
    %1273 = vmatpush.bf16.msra.mxu0 %v985
    %1274 = vmatmul.bf16.gmra.mxu0 %v404
    %v1275 = vpop.f32.mrf.mxu0
    %v1276 = vadd.f32 %v1263, %v1275
    %v1277 = vpop.f32.mrf.mxu0
    %1278 = vdwg.mxu0
    %1279 = vmatpush.bf16.msra.mxu0 %v1000
    %1280 = vmatpush.bf16.msra.mxu0 %v999
    %1281 = vmatpush.bf16.msra.mxu0 %v998
    %1282 = vmatpush.bf16.msra.mxu0 %v997
    %1283 = vmatpush.bf16.msra.mxu0 %v996
    %1284 = vmatpush.bf16.msra.mxu0 %v995
    %1285 = vmatpush.bf16.msra.mxu0 %v994
    %1286 = vmatpush.bf16.msra.mxu0 %v993
    %1287 = vmatmul.bf16.gmra.mxu0 %v405
    %v1288 = vpop.f32.mrf.mxu0
    %v1289 = vadd.f32 %v1276, %v1288
    %v1290 = vpop.f32.mrf.mxu0
    %1291 = vdwg.mxu0
    %1292 = vmatpush.bf16.msra.mxu0 %v1008
    %1293 = vmatpush.bf16.msra.mxu0 %v1007
    %1294 = vmatpush.bf16.msra.mxu0 %v1006
    %1295 = vmatpush.bf16.msra.mxu0 %v1005
    %1296 = vmatpush.bf16.msra.mxu0 %v1004
    %1297 = vmatpush.bf16.msra.mxu0 %v1003
    %1298 = vmatpush.bf16.msra.mxu0 %v1002
    %1299 = vmatpush.bf16.msra.mxu0 %v1001
    %1300 = vmatmul.bf16.gmra.mxu0 %v406
    %v1301 = vpop.f32.mrf.mxu0
    %v1302 = vadd.f32 %v1289, %v1301
    %v1303 = vpop.f32.mrf.mxu0
    %1304 = vdwg.mxu0
    %1305 = vmatpush.bf16.msra.mxu0 %v1016
    %1306 = vmatpush.bf16.msra.mxu0 %v1015
    %1307 = vmatpush.bf16.msra.mxu0 %v1014
    %1308 = vmatpush.bf16.msra.mxu0 %v1013
    %1309 = vmatpush.bf16.msra.mxu0 %v1012
    %1310 = vmatpush.bf16.msra.mxu0 %v1011
    %1311 = vmatpush.bf16.msra.mxu0 %v1010
    %1312 = vmatpush.bf16.msra.mxu0 %v1009
    %1313 = vmatmul.bf16.gmra.mxu0 %v409
    %v1314 = vpop.f32.mrf.mxu0
    %v1315 = vadd.f32 %v1302, %v1314
    %v1316 = vpop.f32.mrf.mxu0
    %1317 = vdwg.mxu0
    %1318 = vmatpush.bf16.msra.mxu0 %v1024
    %1319 = vmatpush.bf16.msra.mxu0 %v1023
    %1320 = vmatpush.bf16.msra.mxu0 %v1022
    %1321 = vmatpush.bf16.msra.mxu0 %v1021
    %1322 = vmatpush.bf16.msra.mxu0 %v1020
    %1323 = vmatpush.bf16.msra.mxu0 %v1019
    %1324 = vmatpush.bf16.msra.mxu0 %v1018
    %1325 = vmatpush.bf16.msra.mxu0 %v1017
    %1326 = vmatmul.bf16.gmra.mxu0 %v410
    %v1327 = vpop.f32.mrf.mxu0
    %v1328 = vadd.f32 %v1315, %v1327
    %v1329 = vpop.f32.mrf.mxu0
    %1330 = vdwg.mxu0
    %1331 = vmatpush.bf16.msra.mxu0 %v1032
    %1332 = vmatpush.bf16.msra.mxu0 %v1031
    %1333 = vmatpush.bf16.msra.mxu0 %v1030
    %1334 = vmatpush.bf16.msra.mxu0 %v1029
    %1335 = vmatpush.bf16.msra.mxu0 %v1028
    %1336 = vmatpush.bf16.msra.mxu0 %v1027
    %1337 = vmatpush.bf16.msra.mxu0 %v1026
    %1338 = vmatpush.bf16.msra.mxu0 %v1025
    %1339 = vmatmul.bf16.gmra.mxu0 %v411
    %v1340 = vpop.f32.mrf.mxu0
    %v1341 = vadd.f32 %v1328, %v1340
    %v1342 = vpop.f32.mrf.mxu0
    %1343 = vdwg.mxu0
    %1344 = vmatpush.bf16.msra.mxu0 %v1040
    %1345 = vmatpush.bf16.msra.mxu0 %v1039
    %1346 = vmatpush.bf16.msra.mxu0 %v1038
    %1347 = vmatpush.bf16.msra.mxu0 %v1037
    %1348 = vmatpush.bf16.msra.mxu0 %v1036
    %1349 = vmatpush.bf16.msra.mxu0 %v1035
    %1350 = vmatpush.bf16.msra.mxu0 %v1034
    %1351 = vmatpush.bf16.msra.mxu0 %v1033
    %1352 = vmatmul.bf16.gmra.mxu0 %v412
    %v1353 = vpop.f32.mrf.mxu0
    %v1354 = vadd.f32 %v1341, %v1353
    %v1355 = vpop.f32.mrf.mxu0
    %1356 = vdwg.mxu0
    %1357 = vmatpush.bf16.msra.mxu0 %v1048
    %1358 = vmatpush.bf16.msra.mxu0 %v1047
    %1359 = vmatpush.bf16.msra.mxu0 %v1046
    %1360 = vmatpush.bf16.msra.mxu0 %v1045
    %1361 = vmatpush.bf16.msra.mxu0 %v1044
    %1362 = vmatpush.bf16.msra.mxu0 %v1043
    %1363 = vmatpush.bf16.msra.mxu0 %v1042
    %1364 = vmatpush.bf16.msra.mxu0 %v1041
    %1365 = vmatmul.bf16.gmra.mxu0 %v413
    %v1366 = vpop.f32.mrf.mxu0
    %v1367 = vadd.f32 %v1354, %v1366
    %v1368 = vpop.f32.mrf.mxu0
    %1369 = vdwg.mxu0
    %1370 = vmatpush.bf16.msra.mxu0 %v1056
    %1371 = vmatpush.bf16.msra.mxu0 %v1055
    %1372 = vmatpush.bf16.msra.mxu0 %v1054
    %1373 = vmatpush.bf16.msra.mxu0 %v1053
    %1374 = vmatpush.bf16.msra.mxu0 %v1052
    %1375 = vmatpush.bf16.msra.mxu0 %v1051
    %1376 = vmatpush.bf16.msra.mxu0 %v1050
    %1377 = vmatpush.bf16.msra.mxu0 %v1049
    %1378 = vmatmul.bf16.gmra.mxu0 %v414
    %v1379 = vpop.f32.mrf.mxu0
    %v1380 = vadd.f32 %v1367, %v1379
    %v1381 = vpop.f32.mrf.mxu0
    %1382 = vdwg.mxu0
    %1383 = vmatpush.bf16.msra.mxu0 %v1064
    %1384 = vmatpush.bf16.msra.mxu0 %v1063
    %1385 = vmatpush.bf16.msra.mxu0 %v1062
    %1386 = vmatpush.bf16.msra.mxu0 %v1061
    %1387 = vmatpush.bf16.msra.mxu0 %v1060
    %1388 = vmatpush.bf16.msra.mxu0 %v1059
    %1389 = vmatpush.bf16.msra.mxu0 %v1058
    %1390 = vmatpush.bf16.msra.mxu0 %v1057
    %1391 = vmatmul.bf16.gmra.mxu0 %v415
    %v1392 = vpop.f32.mrf.mxu0
    %v1393 = vadd.f32 %v1380, %v1392
    %v1394 = vpop.f32.mrf.mxu0
    %1395 = vdwg.mxu0
    %1396 = vmatpush.bf16.msra.mxu0 %v1072
    %1397 = vmatpush.bf16.msra.mxu0 %v1071
    %1398 = vmatpush.bf16.msra.mxu0 %v1070
    %1399 = vmatpush.bf16.msra.mxu0 %v1069
    %1400 = vmatpush.bf16.msra.mxu0 %v1068
    %1401 = vmatpush.bf16.msra.mxu0 %v1067
    %1402 = vmatpush.bf16.msra.mxu0 %v1066
    %1403 = vmatpush.bf16.msra.mxu0 %v1065
    %1404 = vmatmul.bf16.gmra.mxu0 %v416
    %v1405 = vpop.f32.mrf.mxu0
    %v1406 = vadd.f32 %v1393, %v1405
    %v1407 = vpop.f32.mrf.mxu0
    %1408 = vdwg.mxu0
    %v1409 = vmax.f32 %v1406, 0.0
    %v1410 = vpack.c.bf16 %v1409, %v1409
    %v1411 = vld [vmem:[#allocation9] sm:$0xff]
    %v1412 = vld [vmem:[#allocation9 + $0x8] sm:$0xff]
    %v1413 = vld [vmem:[#allocation9 + $0x10] sm:$0xff]
    %v1414 = vld [vmem:[#allocation9 + $0x18] sm:$0xff]
    %v1415 = vld [vmem:[#allocation9 + $0x20] sm:$0xff]
    %v1416 = vld [vmem:[#allocation9 + $0x28] sm:$0xff]
    %v1417 = vld [vmem:[#allocation9 + $0x30] sm:$0xff]
    %v1418 = vld [vmem:[#allocation9 + $0x38] sm:$0xff]
    %v1419 = vld [vmem:[#allocation9 + $0x40] sm:$0xff]
    %v1420 = vld [vmem:[#allocation9 + $0x48] sm:$0xff]
    %v1421 = vld [vmem:[#allocation9 + $0x50] sm:$0xff]
    %v1422 = vld [vmem:[#allocation9 + $0x58] sm:$0xff]
    %v1423 = vld [vmem:[#allocation9 + $0x60] sm:$0xff]
    %v1424 = vld [vmem:[#allocation9 + $0x68] sm:$0xff]
    %v1425 = vld [vmem:[#allocation9 + $0x70] sm:$0xff]
    %v1426 = vld [vmem:[#allocation9 + $0x78] sm:$0xff]
    %v1427 = vld [vmem:[#allocation11] sm:$0x3]
    %v1429 = vperm.slane %v1427, 0
    %v1430 = vperm.slane %v1427, 1
    %v1449 = vunpack.c.l.b16 %v1411
    %v1450 = vunpack.c.h.b16 %v1411
    %v1451 = vunpack.c.l.b16 %v1412
    %v1452 = vunpack.c.h.b16 %v1412
    %v1453 = vunpack.c.l.b16 %v1413
    %v1454 = vunpack.c.h.b16 %v1413
    %v1455 = vunpack.c.l.b16 %v1414
    %v1456 = vunpack.c.h.b16 %v1414
    %v1457 = vunpack.c.l.b16 %v1415
    %v1458 = vunpack.c.h.b16 %v1415
    %v1459 = vunpack.c.l.b16 %v1416
    %v1460 = vunpack.c.h.b16 %v1416
    %v1461 = vunpack.c.l.b16 %v1417
    %v1462 = vunpack.c.h.b16 %v1417
    %v1463 = vunpack.c.l.b16 %v1418
    %v1464 = vunpack.c.h.b16 %v1418
    %v1465 = vunpack.c.l.b16 %v1419
    %v1466 = vunpack.c.h.b16 %v1419
    %v1467 = vunpack.c.l.b16 %v1420
    %v1468 = vunpack.c.h.b16 %v1420
    %v1469 = vunpack.c.l.b16 %v1421
    %v1470 = vunpack.c.h.b16 %v1421
    %v1471 = vunpack.c.l.b16 %v1422
    %v1472 = vunpack.c.h.b16 %v1422
    %v1473 = vunpack.c.l.b16 %v1423
    %v1474 = vunpack.c.h.b16 %v1423
    %v1475 = vunpack.c.l.b16 %v1424
    %v1476 = vunpack.c.h.b16 %v1424
    %v1477 = vunpack.c.l.b16 %v1425
    %v1478 = vunpack.c.h.b16 %v1425
    %v1479 = vunpack.c.l.b16 %v1426
    %v1480 = vunpack.c.h.b16 %v1426
    %v1481 = vpack.c.b16 %v1451, %v1449
    %v1482 = vpack.c.b16 %v1452, %v1450
    %v1483 = vpack.c.b16 %v1455, %v1453
    %v1484 = vpack.c.b16 %v1456, %v1454
    %v1485 = vpack.c.b16 %v1459, %v1457
    %v1486 = vpack.c.b16 %v1460, %v1458
    %v1487 = vpack.c.b16 %v1463, %v1461
    %v1488 = vpack.c.b16 %v1464, %v1462
    %v1489 = vpack.c.b16 %v1467, %v1465
    %v1490 = vpack.c.b16 %v1468, %v1466
    %v1491 = vpack.c.b16 %v1471, %v1469
    %v1492 = vpack.c.b16 %v1472, %v1470
    %v1493 = vpack.c.b16 %v1475, %v1473
    %v1494 = vpack.c.b16 %v1476, %v1474
    %v1495 = vpack.c.b16 %v1479, %v1477
    %v1496 = vpack.c.b16 %v1480, %v1478
    %1513 = vmatpush.bf16.msra.mxu0 %v1495
    %1514 = vmatpush.bf16.msra.mxu0 %v1493
    %1515 = vmatpush.bf16.msra.mxu0 %v1491
    %1516 = vmatpush.bf16.msra.mxu0 %v1489
    %1517 = vmatpush.bf16.msra.mxu0 %v1487
    %1518 = vmatpush.bf16.msra.mxu0 %v1485
    %1519 = vmatpush.bf16.msra.mxu0 %v1483
    %1520 = vmatpush.bf16.msra.mxu0 %v1481
    %1521 = vmatmul.bf16.gmra.mxu0 %v1410
    %v1522 = vpop.f32.mrf.mxu0
    %v1523 = vadd.f32 %v1429, %v1522
    %v1524 = vpop.f32.mrf.mxu0
    %1525 = vdwg.mxu0
    %1526 = vmatpush.bf16.msra.mxu0 %v1496
    %1527 = vmatpush.bf16.msra.mxu0 %v1494
    %1528 = vmatpush.bf16.msra.mxu0 %v1492
    %1529 = vmatpush.bf16.msra.mxu0 %v1490
    %1530 = vmatpush.bf16.msra.mxu0 %v1488
    %1531 = vmatpush.bf16.msra.mxu0 %v1486
    %1532 = vmatpush.bf16.msra.mxu0 %v1484
    %1533 = vmatpush.bf16.msra.mxu0 %v1482
    %1534 = vmatmul.bf16.gmra.mxu0 %v1410
    %v1535 = vpop.f32.mrf.mxu0
    %v1536 = vadd.f32 %v1430, %v1535
    %v1537 = vpop.f32.mrf.mxu0
    %1538 = vdwg.mxu0
    %v1539 = vmax.f32 %v1523, 0.0
    %v1540 = vmax.f32 %v1536, 0.0
    %v1541 = vpack.c.bf16 %v1539, %v1539
    %v1542 = vpack.c.bf16 %v1540, %v1540
    %v1543 = vld [vmem:[#allocation12] sm:$0xff]
    %v1544 = vld [vmem:[#allocation12 + $0x8] sm:$0xff]
    %v1545 = vld [vmem:[#allocation12 + $0x10] sm:$0xff]
    %v1546 = vld [vmem:[#allocation12 + $0x18] sm:$0xff]
    %v1547 = vld [vmem:[#allocation12 + $0x20] sm:$0xff]
    %v1548 = vld [vmem:[#allocation12 + $0x28] sm:$0xff]
    %v1549 = vld [vmem:[#allocation12 + $0x30] sm:$0xff]
    %v1550 = vld [vmem:[#allocation12 + $0x38] sm:$0xff]
    %v1551 = vld [vmem:[#allocation12 + $0x40] sm:$0xff]
    %v1552 = vld [vmem:[#allocation12 + $0x48] sm:$0xff]
    %v1553 = vld [vmem:[#allocation12 + $0x50] sm:$0xff]
    %v1554 = vld [vmem:[#allocation12 + $0x58] sm:$0xff]
    %v1555 = vld [vmem:[#allocation12 + $0x60] sm:$0xff]
    %v1556 = vld [vmem:[#allocation12 + $0x68] sm:$0xff]
    %v1557 = vld [vmem:[#allocation12 + $0x70] sm:$0xff]
    %v1558 = vld [vmem:[#allocation12 + $0x78] sm:$0xff]
    %v1559 = vld [vmem:[#allocation12 + $0x80] sm:$0xff]
    %v1560 = vld [vmem:[#allocation12 + $0x88] sm:$0xff]
    %v1561 = vld [vmem:[#allocation12 + $0x90] sm:$0xff]
    %v1562 = vld [vmem:[#allocation12 + $0x98] sm:$0xff]
    %v1563 = vld [vmem:[#allocation12 + $0xa0] sm:$0xff]
    %v1564 = vld [vmem:[#allocation12 + $0xa8] sm:$0xff]
    %v1565 = vld [vmem:[#allocation12 + $0xb0] sm:$0xff]
    %v1566 = vld [vmem:[#allocation12 + $0xb8] sm:$0xff]
    %v1567 = vld [vmem:[#allocation12 + $0xc0] sm:$0xff]
    %v1568 = vld [vmem:[#allocation12 + $0xc8] sm:$0xff]
    %v1569 = vld [vmem:[#allocation12 + $0xd0] sm:$0xff]
    %v1570 = vld [vmem:[#allocation12 + $0xd8] sm:$0xff]
    %v1571 = vld [vmem:[#allocation12 + $0xe0] sm:$0xff]
    %v1572 = vld [vmem:[#allocation12 + $0xe8] sm:$0xff]
    %v1573 = vld [vmem:[#allocation12 + $0xf0] sm:$0xff]
    %v1574 = vld [vmem:[#allocation12 + $0xf8] sm:$0xff]
    %v1575 = vld [vmem:[#allocation12 + $0x100] sm:$0xff]
    %v1576 = vld [vmem:[#allocation12 + $0x108] sm:$0xff]
    %v1577 = vld [vmem:[#allocation12 + $0x110] sm:$0xff]
    %v1578 = vld [vmem:[#allocation12 + $0x118] sm:$0xff]
    %v1579 = vld [vmem:[#allocation12 + $0x120] sm:$0xff]
    %v1580 = vld [vmem:[#allocation12 + $0x128] sm:$0xff]
    %v1581 = vld [vmem:[#allocation12 + $0x130] sm:$0xff]
    %v1582 = vld [vmem:[#allocation12 + $0x138] sm:$0xff]
    %v1583 = vld [vmem:[#allocation12 + $0x140] sm:$0xff]
    %v1584 = vld [vmem:[#allocation12 + $0x148] sm:$0xff]
    %v1585 = vld [vmem:[#allocation12 + $0x150] sm:$0xff]
    %v1586 = vld [vmem:[#allocation12 + $0x158] sm:$0xff]
    %v1587 = vld [vmem:[#allocation12 + $0x160] sm:$0xff]
    %v1588 = vld [vmem:[#allocation12 + $0x168] sm:$0xff]
    %v1589 = vld [vmem:[#allocation12 + $0x170] sm:$0xff]
    %v1590 = vld [vmem:[#allocation12 + $0x178] sm:$0xff]
    %v1591 = vld [vmem:[#allocation12 + $0x180] sm:$0xff]
    %v1592 = vld [vmem:[#allocation12 + $0x188] sm:$0xff]
    %v1593 = vld [vmem:[#allocation12 + $0x190] sm:$0xff]
    %v1594 = vld [vmem:[#allocation12 + $0x198] sm:$0xff]
    %v1595 = vld [vmem:[#allocation12 + $0x1a0] sm:$0xff]
    %v1596 = vld [vmem:[#allocation12 + $0x1a8] sm:$0xff]
    %v1597 = vld [vmem:[#allocation12 + $0x1b0] sm:$0xff]
    %v1598 = vld [vmem:[#allocation12 + $0x1b8] sm:$0xff]
    %v1599 = vld [vmem:[#allocation12 + $0x1c0] sm:$0xff]
    %v1600 = vld [vmem:[#allocation12 + $0x1c8] sm:$0xff]
    %v1601 = vld [vmem:[#allocation12 + $0x1d0] sm:$0xff]
    %v1602 = vld [vmem:[#allocation12 + $0x1d8] sm:$0xff]
    %v1603 = vld [vmem:[#allocation12 + $0x1e0] sm:$0xff]
    %v1604 = vld [vmem:[#allocation12 + $0x1e8] sm:$0xff]
    %v1605 = vld [vmem:[#allocation12 + $0x1f0] sm:$0xff]
    %v1606 = vld [vmem:[#allocation12 + $0x1f8] sm:$0xff]
    %v1607 = vld [vmem:[#allocation12 + $0x200] sm:$0xff]
    %v1608 = vld [vmem:[#allocation12 + $0x208] sm:$0xff]
    %v1609 = vld [vmem:[#allocation12 + $0x210] sm:$0xff]
    %v1610 = vld [vmem:[#allocation12 + $0x218] sm:$0xff]
    %v1611 = vld [vmem:[#allocation12 + $0x220] sm:$0xff]
    %v1612 = vld [vmem:[#allocation12 + $0x228] sm:$0xff]
    %v1613 = vld [vmem:[#allocation12 + $0x230] sm:$0xff]
    %v1614 = vld [vmem:[#allocation12 + $0x238] sm:$0xff]
    %v1615 = vld [vmem:[#allocation12 + $0x240] sm:$0xff]
    %v1616 = vld [vmem:[#allocation12 + $0x248] sm:$0xff]
    %v1617 = vld [vmem:[#allocation12 + $0x250] sm:$0xff]
    %v1618 = vld [vmem:[#allocation12 + $0x258] sm:$0xff]
    %v1619 = vld [vmem:[#allocation12 + $0x260] sm:$0xff]
    %v1620 = vld [vmem:[#allocation12 + $0x268] sm:$0xff]
    %v1621 = vld [vmem:[#allocation12 + $0x270] sm:$0xff]
    %v1622 = vld [vmem:[#allocation12 + $0x278] sm:$0xff]
    %v1623 = vld [vmem:[#allocation12 + $0x280] sm:$0xff]
    %v1624 = vld [vmem:[#allocation12 + $0x288] sm:$0xff]
    %v1625 = vld [vmem:[#allocation12 + $0x290] sm:$0xff]
    %v1626 = vld [vmem:[#allocation12 + $0x298] sm:$0xff]
    %v1627 = vld [vmem:[#allocation12 + $0x2a0] sm:$0xff]
    %v1628 = vld [vmem:[#allocation12 + $0x2a8] sm:$0xff]
    %v1629 = vld [vmem:[#allocation12 + $0x2b0] sm:$0xff]
    %v1630 = vld [vmem:[#allocation12 + $0x2b8] sm:$0xff]
    %v1631 = vld [vmem:[#allocation12 + $0x2c0] sm:$0xff]
    %v1632 = vld [vmem:[#allocation12 + $0x2c8] sm:$0xff]
    %v1633 = vld [vmem:[#allocation12 + $0x2d0] sm:$0xff]
    %v1634 = vld [vmem:[#allocation12 + $0x2d8] sm:$0xff]
    %v1635 = vld [vmem:[#allocation12 + $0x2e0] sm:$0xff]
    %v1636 = vld [vmem:[#allocation12 + $0x2e8] sm:$0xff]
    %v1637 = vld [vmem:[#allocation12 + $0x2f0] sm:$0xff]
    %v1638 = vld [vmem:[#allocation12 + $0x2f8] sm:$0xff]
    %v1639 = vld [vmem:[#allocation12 + $0x300] sm:$0xff]
    %v1640 = vld [vmem:[#allocation12 + $0x308] sm:$0xff]
    %v1641 = vld [vmem:[#allocation12 + $0x310] sm:$0xff]
    %v1642 = vld [vmem:[#allocation12 + $0x318] sm:$0xff]
    %v1643 = vld [vmem:[#allocation12 + $0x320] sm:$0xff]
    %v1644 = vld [vmem:[#allocation12 + $0x328] sm:$0xff]
    %v1645 = vld [vmem:[#allocation12 + $0x330] sm:$0xff]
    %v1646 = vld [vmem:[#allocation12 + $0x338] sm:$0xff]
    %v1647 = vld [vmem:[#allocation12 + $0x340] sm:$0xff]
    %v1648 = vld [vmem:[#allocation12 + $0x348] sm:$0xff]
    %v1649 = vld [vmem:[#allocation12 + $0x350] sm:$0xff]
    %v1650 = vld [vmem:[#allocation12 + $0x358] sm:$0xff]
    %v1651 = vld [vmem:[#allocation12 + $0x360] sm:$0xff]
    %v1652 = vld [vmem:[#allocation12 + $0x368] sm:$0xff]
    %v1653 = vld [vmem:[#allocation12 + $0x370] sm:$0xff]
    %v1654 = vld [vmem:[#allocation12 + $0x378] sm:$0xff]
    %v1655 = vld [vmem:[#allocation12 + $0x380] sm:$0xff]
    %v1656 = vld [vmem:[#allocation12 + $0x388] sm:$0xff]
    %v1657 = vld [vmem:[#allocation12 + $0x390] sm:$0xff]
    %v1658 = vld [vmem:[#allocation12 + $0x398] sm:$0xff]
    %v1659 = vld [vmem:[#allocation12 + $0x3a0] sm:$0xff]
    %v1660 = vld [vmem:[#allocation12 + $0x3a8] sm:$0xff]
    %v1661 = vld [vmem:[#allocation12 + $0x3b0] sm:$0xff]
    %v1662 = vld [vmem:[#allocation12 + $0x3b8] sm:$0xff]
    %v1663 = vld [vmem:[#allocation12 + $0x3c0] sm:$0xff]
    %v1664 = vld [vmem:[#allocation12 + $0x3c8] sm:$0xff]
    %v1665 = vld [vmem:[#allocation12 + $0x3d0] sm:$0xff]
    %v1666 = vld [vmem:[#allocation12 + $0x3d8] sm:$0xff]
    %v1667 = vld [vmem:[#allocation12 + $0x3e0] sm:$0xff]
    %v1668 = vld [vmem:[#allocation12 + $0x3e8] sm:$0xff]
    %v1669 = vld [vmem:[#allocation12 + $0x3f0] sm:$0xff]
    %v1670 = vld [vmem:[#allocation12 + $0x3f8] sm:$0xff]
    %v1671 = vld [vmem:[#allocation14] sm:$0xff]
    %v1673 = vperm.slane %v1671, 0
    %v1674 = vperm.slane %v1671, 1
    %v1675 = vperm.slane %v1671, 2
    %v1676 = vperm.slane %v1671, 3
    %v1677 = vperm.slane %v1671, 4
    %v1678 = vperm.slane %v1671, 5
    %v1679 = vperm.slane %v1671, 6
    %v1680 = vperm.slane %v1671, 7
    %v1817 = vunpack.c.l.b16 %v1543
    %v1818 = vunpack.c.h.b16 %v1543
    %v1819 = vunpack.c.l.b16 %v1544
    %v1820 = vunpack.c.h.b16 %v1544
    %v1821 = vunpack.c.l.b16 %v1545
    %v1822 = vunpack.c.h.b16 %v1545
    %v1823 = vunpack.c.l.b16 %v1546
    %v1824 = vunpack.c.h.b16 %v1546
    %v1825 = vunpack.c.l.b16 %v1547
    %v1826 = vunpack.c.h.b16 %v1547
    %v1827 = vunpack.c.l.b16 %v1548
    %v1828 = vunpack.c.h.b16 %v1548
    %v1829 = vunpack.c.l.b16 %v1549
    %v1830 = vunpack.c.h.b16 %v1549
    %v1831 = vunpack.c.l.b16 %v1550
    %v1832 = vunpack.c.h.b16 %v1550
    %v1833 = vunpack.c.l.b16 %v1551
    %v1834 = vunpack.c.h.b16 %v1551
    %v1835 = vunpack.c.l.b16 %v1552
    %v1836 = vunpack.c.h.b16 %v1552
    %v1837 = vunpack.c.l.b16 %v1553
    %v1838 = vunpack.c.h.b16 %v1553
    %v1839 = vunpack.c.l.b16 %v1554
    %v1840 = vunpack.c.h.b16 %v1554
    %v1841 = vunpack.c.l.b16 %v1555
    %v1842 = vunpack.c.h.b16 %v1555
    %v1843 = vunpack.c.l.b16 %v1556
    %v1844 = vunpack.c.h.b16 %v1556
    %v1845 = vunpack.c.l.b16 %v1557
    %v1846 = vunpack.c.h.b16 %v1557
    %v1847 = vunpack.c.l.b16 %v1558
    %v1848 = vunpack.c.h.b16 %v1558
    %v1849 = vunpack.c.l.b16 %v1559
    %v1850 = vunpack.c.h.b16 %v1559
    %v1851 = vunpack.c.l.b16 %v1560
    %v1852 = vunpack.c.h.b16 %v1560
    %v1853 = vunpack.c.l.b16 %v1561
    %v1854 = vunpack.c.h.b16 %v1561
    %v1855 = vunpack.c.l.b16 %v1562
    %v1856 = vunpack.c.h.b16 %v1562
    %v1857 = vunpack.c.l.b16 %v1563
    %v1858 = vunpack.c.h.b16 %v1563
    %v1859 = vunpack.c.l.b16 %v1564
    %v1860 = vunpack.c.h.b16 %v1564
    %v1861 = vunpack.c.l.b16 %v1565
    %v1862 = vunpack.c.h.b16 %v1565
    %v1863 = vunpack.c.l.b16 %v1566
    %v1864 = vunpack.c.h.b16 %v1566
    %v1865 = vunpack.c.l.b16 %v1567
    %v1866 = vunpack.c.h.b16 %v1567
    %v1867 = vunpack.c.l.b16 %v1568
    %v1868 = vunpack.c.h.b16 %v1568
    %v1869 = vunpack.c.l.b16 %v1569
    %v1870 = vunpack.c.h.b16 %v1569
    %v1871 = vunpack.c.l.b16 %v1570
    %v1872 = vunpack.c.h.b16 %v1570
    %v1873 = vunpack.c.l.b16 %v1571
    %v1874 = vunpack.c.h.b16 %v1571
    %v1875 = vunpack.c.l.b16 %v1572
    %v1876 = vunpack.c.h.b16 %v1572
    %v1877 = vunpack.c.l.b16 %v1573
    %v1878 = vunpack.c.h.b16 %v1573
    %v1879 = vunpack.c.l.b16 %v1574
    %v1880 = vunpack.c.h.b16 %v1574
    %v1881 = vunpack.c.l.b16 %v1575
    %v1882 = vunpack.c.h.b16 %v1575
    %v1883 = vunpack.c.l.b16 %v1576
    %v1884 = vunpack.c.h.b16 %v1576
    %v1885 = vunpack.c.l.b16 %v1577
    %v1886 = vunpack.c.h.b16 %v1577
    %v1887 = vunpack.c.l.b16 %v1578
    %v1888 = vunpack.c.h.b16 %v1578
    %v1889 = vunpack.c.l.b16 %v1579
    %v1890 = vunpack.c.h.b16 %v1579
    %v1891 = vunpack.c.l.b16 %v1580
    %v1892 = vunpack.c.h.b16 %v1580
    %v1893 = vunpack.c.l.b16 %v1581
    %v1894 = vunpack.c.h.b16 %v1581
    %v1895 = vunpack.c.l.b16 %v1582
    %v1896 = vunpack.c.h.b16 %v1582
    %v1897 = vunpack.c.l.b16 %v1583
    %v1898 = vunpack.c.h.b16 %v1583
    %v1899 = vunpack.c.l.b16 %v1584
    %v1900 = vunpack.c.h.b16 %v1584
    %v1901 = vunpack.c.l.b16 %v1585
    %v1902 = vunpack.c.h.b16 %v1585
    %v1903 = vunpack.c.l.b16 %v1586
    %v1904 = vunpack.c.h.b16 %v1586
    %v1905 = vunpack.c.l.b16 %v1587
    %v1906 = vunpack.c.h.b16 %v1587
    %v1907 = vunpack.c.l.b16 %v1588
    %v1908 = vunpack.c.h.b16 %v1588
    %v1909 = vunpack.c.l.b16 %v1589
    %v1910 = vunpack.c.h.b16 %v1589
    %v1911 = vunpack.c.l.b16 %v1590
    %v1912 = vunpack.c.h.b16 %v1590
    %v1913 = vunpack.c.l.b16 %v1591
    %v1914 = vunpack.c.h.b16 %v1591
    %v1915 = vunpack.c.l.b16 %v1592
    %v1916 = vunpack.c.h.b16 %v1592
    %v1917 = vunpack.c.l.b16 %v1593
    %v1918 = vunpack.c.h.b16 %v1593
    %v1919 = vunpack.c.l.b16 %v1594
    %v1920 = vunpack.c.h.b16 %v1594
    %v1921 = vunpack.c.l.b16 %v1595
    %v1922 = vunpack.c.h.b16 %v1595
    %v1923 = vunpack.c.l.b16 %v1596
    %v1924 = vunpack.c.h.b16 %v1596
    %v1925 = vunpack.c.l.b16 %v1597
    %v1926 = vunpack.c.h.b16 %v1597
    %v1927 = vunpack.c.l.b16 %v1598
    %v1928 = vunpack.c.h.b16 %v1598
    %v1929 = vunpack.c.l.b16 %v1599
    %v1930 = vunpack.c.h.b16 %v1599
    %v1931 = vunpack.c.l.b16 %v1600
    %v1932 = vunpack.c.h.b16 %v1600
    %v1933 = vunpack.c.l.b16 %v1601
    %v1934 = vunpack.c.h.b16 %v1601
    %v1935 = vunpack.c.l.b16 %v1602
    %v1936 = vunpack.c.h.b16 %v1602
    %v1937 = vunpack.c.l.b16 %v1603
    %v1938 = vunpack.c.h.b16 %v1603
    %v1939 = vunpack.c.l.b16 %v1604
    %v1940 = vunpack.c.h.b16 %v1604
    %v1941 = vunpack.c.l.b16 %v1605
    %v1942 = vunpack.c.h.b16 %v1605
    %v1943 = vunpack.c.l.b16 %v1606
    %v1944 = vunpack.c.h.b16 %v1606
    %v1945 = vunpack.c.l.b16 %v1607
    %v1946 = vunpack.c.h.b16 %v1607
    %v1947 = vunpack.c.l.b16 %v1608
    %v1948 = vunpack.c.h.b16 %v1608
    %v1949 = vunpack.c.l.b16 %v1609
    %v1950 = vunpack.c.h.b16 %v1609
    %v1951 = vunpack.c.l.b16 %v1610
    %v1952 = vunpack.c.h.b16 %v1610
    %v1953 = vunpack.c.l.b16 %v1611
    %v1954 = vunpack.c.h.b16 %v1611
    %v1955 = vunpack.c.l.b16 %v1612
    %v1956 = vunpack.c.h.b16 %v1612
    %v1957 = vunpack.c.l.b16 %v1613
    %v1958 = vunpack.c.h.b16 %v1613
    %v1959 = vunpack.c.l.b16 %v1614
    %v1960 = vunpack.c.h.b16 %v1614
    %v1961 = vunpack.c.l.b16 %v1615
    %v1962 = vunpack.c.h.b16 %v1615
    %v1963 = vunpack.c.l.b16 %v1616
    %v1964 = vunpack.c.h.b16 %v1616
    %v1965 = vunpack.c.l.b16 %v1617
    %v1966 = vunpack.c.h.b16 %v1617
    %v1967 = vunpack.c.l.b16 %v1618
    %v1968 = vunpack.c.h.b16 %v1618
    %v1969 = vunpack.c.l.b16 %v1619
    %v1970 = vunpack.c.h.b16 %v1619
    %v1971 = vunpack.c.l.b16 %v1620
    %v1972 = vunpack.c.h.b16 %v1620
    %v1973 = vunpack.c.l.b16 %v1621
    %v1974 = vunpack.c.h.b16 %v1621
    %v1975 = vunpack.c.l.b16 %v1622
    %v1976 = vunpack.c.h.b16 %v1622
    %v1977 = vunpack.c.l.b16 %v1623
    %v1978 = vunpack.c.h.b16 %v1623
    %v1979 = vunpack.c.l.b16 %v1624
    %v1980 = vunpack.c.h.b16 %v1624
    %v1981 = vunpack.c.l.b16 %v1625
    %v1982 = vunpack.c.h.b16 %v1625
    %v1983 = vunpack.c.l.b16 %v1626
    %v1984 = vunpack.c.h.b16 %v1626
    %v1985 = vunpack.c.l.b16 %v1627
    %v1986 = vunpack.c.h.b16 %v1627
    %v1987 = vunpack.c.l.b16 %v1628
    %v1988 = vunpack.c.h.b16 %v1628
    %v1989 = vunpack.c.l.b16 %v1629
    %v1990 = vunpack.c.h.b16 %v1629
    %v1991 = vunpack.c.l.b16 %v1630
    %v1992 = vunpack.c.h.b16 %v1630
    %v1993 = vunpack.c.l.b16 %v1631
    %v1994 = vunpack.c.h.b16 %v1631
    %v1995 = vunpack.c.l.b16 %v1632
    %v1996 = vunpack.c.h.b16 %v1632
    %v1997 = vunpack.c.l.b16 %v1633
    %v1998 = vunpack.c.h.b16 %v1633
    %v1999 = vunpack.c.l.b16 %v1634
    %v2000 = vunpack.c.h.b16 %v1634
    %v2001 = vunpack.c.l.b16 %v1635
    %v2002 = vunpack.c.h.b16 %v1635
    %v2003 = vunpack.c.l.b16 %v1636
    %v2004 = vunpack.c.h.b16 %v1636
    %v2005 = vunpack.c.l.b16 %v1637
    %v2006 = vunpack.c.h.b16 %v1637
    %v2007 = vunpack.c.l.b16 %v1638
    %v2008 = vunpack.c.h.b16 %v1638
    %v2009 = vunpack.c.l.b16 %v1639
    %v2010 = vunpack.c.h.b16 %v1639
    %v2011 = vunpack.c.l.b16 %v1640
    %v2012 = vunpack.c.h.b16 %v1640
    %v2013 = vunpack.c.l.b16 %v1641
    %v2014 = vunpack.c.h.b16 %v1641
    %v2015 = vunpack.c.l.b16 %v1642
    %v2016 = vunpack.c.h.b16 %v1642
    %v2017 = vunpack.c.l.b16 %v1643
    %v2018 = vunpack.c.h.b16 %v1643
    %v2019 = vunpack.c.l.b16 %v1644
    %v2020 = vunpack.c.h.b16 %v1644
    %v2021 = vunpack.c.l.b16 %v1645
    %v2022 = vunpack.c.h.b16 %v1645
    %v2023 = vunpack.c.l.b16 %v1646
    %v2024 = vunpack.c.h.b16 %v1646
    %v2025 = vunpack.c.l.b16 %v1647
    %v2026 = vunpack.c.h.b16 %v1647
    %v2027 = vunpack.c.l.b16 %v1648
    %v2028 = vunpack.c.h.b16 %v1648
    %v2029 = vunpack.c.l.b16 %v1649
    %v2030 = vunpack.c.h.b16 %v1649
    %v2031 = vunpack.c.l.b16 %v1650
    %v2032 = vunpack.c.h.b16 %v1650
    %v2033 = vunpack.c.l.b16 %v1651
    %v2034 = vunpack.c.h.b16 %v1651
    %v2035 = vunpack.c.l.b16 %v1652
    %v2036 = vunpack.c.h.b16 %v1652
    %v2037 = vunpack.c.l.b16 %v1653
    %v2038 = vunpack.c.h.b16 %v1653
    %v2039 = vunpack.c.l.b16 %v1654
    %v2040 = vunpack.c.h.b16 %v1654
    %v2041 = vunpack.c.l.b16 %v1655
    %v2042 = vunpack.c.h.b16 %v1655
    %v2043 = vunpack.c.l.b16 %v1656
    %v2044 = vunpack.c.h.b16 %v1656
    %v2045 = vunpack.c.l.b16 %v1657
    %v2046 = vunpack.c.h.b16 %v1657
    %v2047 = vunpack.c.l.b16 %v1658
    %v2048 = vunpack.c.h.b16 %v1658
    %v2049 = vunpack.c.l.b16 %v1659
    %v2050 = vunpack.c.h.b16 %v1659
    %v2051 = vunpack.c.l.b16 %v1660
    %v2052 = vunpack.c.h.b16 %v1660
    %v2053 = vunpack.c.l.b16 %v1661
    %v2054 = vunpack.c.h.b16 %v1661
    %v2055 = vunpack.c.l.b16 %v1662
    %v2056 = vunpack.c.h.b16 %v1662
    %v2057 = vunpack.c.l.b16 %v1663
    %v2058 = vunpack.c.h.b16 %v1663
    %v2059 = vunpack.c.l.b16 %v1664
    %v2060 = vunpack.c.h.b16 %v1664
    %v2061 = vunpack.c.l.b16 %v1665
    %v2062 = vunpack.c.h.b16 %v1665
    %v2063 = vunpack.c.l.b16 %v1666
    %v2064 = vunpack.c.h.b16 %v1666
    %v2065 = vunpack.c.l.b16 %v1667
    %v2066 = vunpack.c.h.b16 %v1667
    %v2067 = vunpack.c.l.b16 %v1668
    %v2068 = vunpack.c.h.b16 %v1668
    %v2069 = vunpack.c.l.b16 %v1669
    %v2070 = vunpack.c.h.b16 %v1669
    %v2071 = vunpack.c.l.b16 %v1670
    %v2072 = vunpack.c.h.b16 %v1670
    %v2073 = vpack.c.b16 %v1825, %v1817
    %v2074 = vpack.c.b16 %v1826, %v1818
    %v2075 = vpack.c.b16 %v1827, %v1819
    %v2076 = vpack.c.b16 %v1828, %v1820
    %v2077 = vpack.c.b16 %v1829, %v1821
    %v2078 = vpack.c.b16 %v1830, %v1822
    %v2079 = vpack.c.b16 %v1831, %v1823
    %v2080 = vpack.c.b16 %v1832, %v1824
    %v2081 = vpack.c.b16 %v1841, %v1833
    %v2082 = vpack.c.b16 %v1842, %v1834
    %v2083 = vpack.c.b16 %v1843, %v1835
    %v2084 = vpack.c.b16 %v1844, %v1836
    %v2085 = vpack.c.b16 %v1845, %v1837
    %v2086 = vpack.c.b16 %v1846, %v1838
    %v2087 = vpack.c.b16 %v1847, %v1839
    %v2088 = vpack.c.b16 %v1848, %v1840
    %v2089 = vpack.c.b16 %v1857, %v1849
    %v2090 = vpack.c.b16 %v1858, %v1850
    %v2091 = vpack.c.b16 %v1859, %v1851
    %v2092 = vpack.c.b16 %v1860, %v1852
    %v2093 = vpack.c.b16 %v1861, %v1853
    %v2094 = vpack.c.b16 %v1862, %v1854
    %v2095 = vpack.c.b16 %v1863, %v1855
    %v2096 = vpack.c.b16 %v1864, %v1856
    %v2097 = vpack.c.b16 %v1873, %v1865
    %v2098 = vpack.c.b16 %v1874, %v1866
    %v2099 = vpack.c.b16 %v1875, %v1867
    %v2100 = vpack.c.b16 %v1876, %v1868
    %v2101 = vpack.c.b16 %v1877, %v1869
    %v2102 = vpack.c.b16 %v1878, %v1870
    %v2103 = vpack.c.b16 %v1879, %v1871
    %v2104 = vpack.c.b16 %v1880, %v1872
    %v2105 = vpack.c.b16 %v1889, %v1881
    %v2106 = vpack.c.b16 %v1890, %v1882
    %v2107 = vpack.c.b16 %v1891, %v1883
    %v2108 = vpack.c.b16 %v1892, %v1884
    %v2109 = vpack.c.b16 %v1893, %v1885
    %v2110 = vpack.c.b16 %v1894, %v1886
    %v2111 = vpack.c.b16 %v1895, %v1887
    %v2112 = vpack.c.b16 %v1896, %v1888
    %v2113 = vpack.c.b16 %v1905, %v1897
    %v2114 = vpack.c.b16 %v1906, %v1898
    %v2115 = vpack.c.b16 %v1907, %v1899
    %v2116 = vpack.c.b16 %v1908, %v1900
    %v2117 = vpack.c.b16 %v1909, %v1901
    %v2118 = vpack.c.b16 %v1910, %v1902
    %v2119 = vpack.c.b16 %v1911, %v1903
    %v2120 = vpack.c.b16 %v1912, %v1904
    %v2121 = vpack.c.b16 %v1921, %v1913
    %v2122 = vpack.c.b16 %v1922, %v1914
    %v2123 = vpack.c.b16 %v1923, %v1915
    %v2124 = vpack.c.b16 %v1924, %v1916
    %v2125 = vpack.c.b16 %v1925, %v1917
    %v2126 = vpack.c.b16 %v1926, %v1918
    %v2127 = vpack.c.b16 %v1927, %v1919
    %v2128 = vpack.c.b16 %v1928, %v1920
    %v2129 = vpack.c.b16 %v1937, %v1929
    %v2130 = vpack.c.b16 %v1938, %v1930
    %v2131 = vpack.c.b16 %v1939, %v1931
    %v2132 = vpack.c.b16 %v1940, %v1932
    %v2133 = vpack.c.b16 %v1941, %v1933
    %v2134 = vpack.c.b16 %v1942, %v1934
    %v2135 = vpack.c.b16 %v1943, %v1935
    %v2136 = vpack.c.b16 %v1944, %v1936
    %v2137 = vpack.c.b16 %v1953, %v1945
    %v2138 = vpack.c.b16 %v1954, %v1946
    %v2139 = vpack.c.b16 %v1955, %v1947
    %v2140 = vpack.c.b16 %v1956, %v1948
    %v2141 = vpack.c.b16 %v1957, %v1949
    %v2142 = vpack.c.b16 %v1958, %v1950
    %v2143 = vpack.c.b16 %v1959, %v1951
    %v2144 = vpack.c.b16 %v1960, %v1952
    %v2145 = vpack.c.b16 %v1969, %v1961
    %v2146 = vpack.c.b16 %v1970, %v1962
    %v2147 = vpack.c.b16 %v1971, %v1963
    %v2148 = vpack.c.b16 %v1972, %v1964
    %v2149 = vpack.c.b16 %v1973, %v1965
    %v2150 = vpack.c.b16 %v1974, %v1966
    %v2151 = vpack.c.b16 %v1975, %v1967
    %v2152 = vpack.c.b16 %v1976, %v1968
    %v2153 = vpack.c.b16 %v1985, %v1977
    %v2154 = vpack.c.b16 %v1986, %v1978
    %v2155 = vpack.c.b16 %v1987, %v1979
    %v2156 = vpack.c.b16 %v1988, %v1980
    %v2157 = vpack.c.b16 %v1989, %v1981
    %v2158 = vpack.c.b16 %v1990, %v1982
    %v2159 = vpack.c.b16 %v1991, %v1983
    %v2160 = vpack.c.b16 %v1992, %v1984
    %v2161 = vpack.c.b16 %v2001, %v1993
    %v2162 = vpack.c.b16 %v2002, %v1994
    %v2163 = vpack.c.b16 %v2003, %v1995
    %v2164 = vpack.c.b16 %v2004, %v1996
    %v2165 = vpack.c.b16 %v2005, %v1997
    %v2166 = vpack.c.b16 %v2006, %v1998
    %v2167 = vpack.c.b16 %v2007, %v1999
    %v2168 = vpack.c.b16 %v2008, %v2000
    %v2169 = vpack.c.b16 %v2017, %v2009
    %v2170 = vpack.c.b16 %v2018, %v2010
    %v2171 = vpack.c.b16 %v2019, %v2011
    %v2172 = vpack.c.b16 %v2020, %v2012
    %v2173 = vpack.c.b16 %v2021, %v2013
    %v2174 = vpack.c.b16 %v2022, %v2014
    %v2175 = vpack.c.b16 %v2023, %v2015
    %v2176 = vpack.c.b16 %v2024, %v2016
    %v2177 = vpack.c.b16 %v2033, %v2025
    %v2178 = vpack.c.b16 %v2034, %v2026
    %v2179 = vpack.c.b16 %v2035, %v2027
    %v2180 = vpack.c.b16 %v2036, %v2028
    %v2181 = vpack.c.b16 %v2037, %v2029
    %v2182 = vpack.c.b16 %v2038, %v2030
    %v2183 = vpack.c.b16 %v2039, %v2031
    %v2184 = vpack.c.b16 %v2040, %v2032
    %v2185 = vpack.c.b16 %v2049, %v2041
    %v2186 = vpack.c.b16 %v2050, %v2042
    %v2187 = vpack.c.b16 %v2051, %v2043
    %v2188 = vpack.c.b16 %v2052, %v2044
    %v2189 = vpack.c.b16 %v2053, %v2045
    %v2190 = vpack.c.b16 %v2054, %v2046
    %v2191 = vpack.c.b16 %v2055, %v2047
    %v2192 = vpack.c.b16 %v2056, %v2048
    %v2193 = vpack.c.b16 %v2065, %v2057
    %v2194 = vpack.c.b16 %v2066, %v2058
    %v2195 = vpack.c.b16 %v2067, %v2059
    %v2196 = vpack.c.b16 %v2068, %v2060
    %v2197 = vpack.c.b16 %v2069, %v2061
    %v2198 = vpack.c.b16 %v2070, %v2062
    %v2199 = vpack.c.b16 %v2071, %v2063
    %v2200 = vpack.c.b16 %v2072, %v2064
    %2329 = vmatpush.bf16.msra.mxu0 %v2129
    %2330 = vmatpush.bf16.msra.mxu0 %v2121
    %2331 = vmatpush.bf16.msra.mxu0 %v2113
    %2332 = vmatpush.bf16.msra.mxu0 %v2105
    %2333 = vmatpush.bf16.msra.mxu0 %v2097
    %2334 = vmatpush.bf16.msra.mxu0 %v2089
    %2335 = vmatpush.bf16.msra.mxu0 %v2081
    %2336 = vmatpush.bf16.msra.mxu0 %v2073
    %2337 = vmatmul.bf16.gmra.mxu0 %v1541
    %v2338 = vpop.f32.mrf.mxu0
    %v2339 = vadd.f32 %v1673, %v2338
    %v2340 = vpop.f32.mrf.mxu0
    %2341 = vdwg.mxu0
    %2342 = vmatpush.bf16.msra.mxu0 %v2193
    %2343 = vmatpush.bf16.msra.mxu0 %v2185
    %2344 = vmatpush.bf16.msra.mxu0 %v2177
    %2345 = vmatpush.bf16.msra.mxu0 %v2169
    %2346 = vmatpush.bf16.msra.mxu0 %v2161
    %2347 = vmatpush.bf16.msra.mxu0 %v2153
    %2348 = vmatpush.bf16.msra.mxu0 %v2145
    %2349 = vmatpush.bf16.msra.mxu0 %v2137
    %2350 = vmatmul.bf16.gmra.mxu0 %v1542
    %v2351 = vpop.f32.mrf.mxu0
    %v2352 = vadd.f32 %v2339, %v2351
    %v2353 = vpop.f32.mrf.mxu0
    %2354 = vdwg.mxu0
    %2355 = vmatpush.bf16.msra.mxu0 %v2130
    %2356 = vmatpush.bf16.msra.mxu0 %v2122
    %2357 = vmatpush.bf16.msra.mxu0 %v2114
    %2358 = vmatpush.bf16.msra.mxu0 %v2106
    %2359 = vmatpush.bf16.msra.mxu0 %v2098
    %2360 = vmatpush.bf16.msra.mxu0 %v2090
    %2361 = vmatpush.bf16.msra.mxu0 %v2082
    %2362 = vmatpush.bf16.msra.mxu0 %v2074
    %2363 = vmatmul.bf16.gmra.mxu0 %v1541
    %v2364 = vpop.f32.mrf.mxu0
    %v2365 = vadd.f32 %v1674, %v2364
    %v2366 = vpop.f32.mrf.mxu0
    %2367 = vdwg.mxu0
    %2368 = vmatpush.bf16.msra.mxu0 %v2194
    %2369 = vmatpush.bf16.msra.mxu0 %v2186
    %2370 = vmatpush.bf16.msra.mxu0 %v2178
    %2371 = vmatpush.bf16.msra.mxu0 %v2170
    %2372 = vmatpush.bf16.msra.mxu0 %v2162
    %2373 = vmatpush.bf16.msra.mxu0 %v2154
    %2374 = vmatpush.bf16.msra.mxu0 %v2146
    %2375 = vmatpush.bf16.msra.mxu0 %v2138
    %2376 = vmatmul.bf16.gmra.mxu0 %v1542
    %v2377 = vpop.f32.mrf.mxu0
    %v2378 = vadd.f32 %v2365, %v2377
    %v2379 = vpop.f32.mrf.mxu0
    %2380 = vdwg.mxu0
    %2381 = vmatpush.bf16.msra.mxu0 %v2131
    %2382 = vmatpush.bf16.msra.mxu0 %v2123
    %2383 = vmatpush.bf16.msra.mxu0 %v2115
    %2384 = vmatpush.bf16.msra.mxu0 %v2107
    %2385 = vmatpush.bf16.msra.mxu0 %v2099
    %2386 = vmatpush.bf16.msra.mxu0 %v2091
    %2387 = vmatpush.bf16.msra.mxu0 %v2083
    %2388 = vmatpush.bf16.msra.mxu0 %v2075
    %2389 = vmatmul.bf16.gmra.mxu0 %v1541
    %v2390 = vpop.f32.mrf.mxu0
    %v2391 = vadd.f32 %v1675, %v2390
    %v2392 = vpop.f32.mrf.mxu0
    %2393 = vdwg.mxu0
    %2394 = vmatpush.bf16.msra.mxu0 %v2195
    %2395 = vmatpush.bf16.msra.mxu0 %v2187
    %2396 = vmatpush.bf16.msra.mxu0 %v2179
    %2397 = vmatpush.bf16.msra.mxu0 %v2171
    %2398 = vmatpush.bf16.msra.mxu0 %v2163
    %2399 = vmatpush.bf16.msra.mxu0 %v2155
    %2400 = vmatpush.bf16.msra.mxu0 %v2147
    %2401 = vmatpush.bf16.msra.mxu0 %v2139
    %2402 = vmatmul.bf16.gmra.mxu0 %v1542
    %v2403 = vpop.f32.mrf.mxu0
    %v2404 = vadd.f32 %v2391, %v2403
    %v2405 = vpop.f32.mrf.mxu0
    %2406 = vdwg.mxu0
    %2407 = vmatpush.bf16.msra.mxu0 %v2132
    %2408 = vmatpush.bf16.msra.mxu0 %v2124
    %2409 = vmatpush.bf16.msra.mxu0 %v2116
    %2410 = vmatpush.bf16.msra.mxu0 %v2108
    %2411 = vmatpush.bf16.msra.mxu0 %v2100
    %2412 = vmatpush.bf16.msra.mxu0 %v2092
    %2413 = vmatpush.bf16.msra.mxu0 %v2084
    %2414 = vmatpush.bf16.msra.mxu0 %v2076
    %2415 = vmatmul.bf16.gmra.mxu0 %v1541
    %v2416 = vpop.f32.mrf.mxu0
    %v2417 = vadd.f32 %v1676, %v2416
    %v2418 = vpop.f32.mrf.mxu0
    %2419 = vdwg.mxu0
    %2420 = vmatpush.bf16.msra.mxu0 %v2196
    %2421 = vmatpush.bf16.msra.mxu0 %v2188
    %2422 = vmatpush.bf16.msra.mxu0 %v2180
    %2423 = vmatpush.bf16.msra.mxu0 %v2172
    %2424 = vmatpush.bf16.msra.mxu0 %v2164
    %2425 = vmatpush.bf16.msra.mxu0 %v2156
    %2426 = vmatpush.bf16.msra.mxu0 %v2148
    %2427 = vmatpush.bf16.msra.mxu0 %v2140
    %2428 = vmatmul.bf16.gmra.mxu0 %v1542
    %v2429 = vpop.f32.mrf.mxu0
    %v2430 = vadd.f32 %v2417, %v2429
    %v2431 = vpop.f32.mrf.mxu0
    %2432 = vdwg.mxu0
    %2433 = vmatpush.bf16.msra.mxu0 %v2133
    %2434 = vmatpush.bf16.msra.mxu0 %v2125
    %2435 = vmatpush.bf16.msra.mxu0 %v2117
    %2436 = vmatpush.bf16.msra.mxu0 %v2109
    %2437 = vmatpush.bf16.msra.mxu0 %v2101
    %2438 = vmatpush.bf16.msra.mxu0 %v2093
    %2439 = vmatpush.bf16.msra.mxu0 %v2085
    %2440 = vmatpush.bf16.msra.mxu0 %v2077
    %2441 = vmatmul.bf16.gmra.mxu0 %v1541
    %v2442 = vpop.f32.mrf.mxu0
    %v2443 = vadd.f32 %v1677, %v2442
    %v2444 = vpop.f32.mrf.mxu0
    %2445 = vdwg.mxu0
    %2446 = vmatpush.bf16.msra.mxu0 %v2197
    %2447 = vmatpush.bf16.msra.mxu0 %v2189
    %2448 = vmatpush.bf16.msra.mxu0 %v2181
    %2449 = vmatpush.bf16.msra.mxu0 %v2173
    %2450 = vmatpush.bf16.msra.mxu0 %v2165
    %2451 = vmatpush.bf16.msra.mxu0 %v2157
    %2452 = vmatpush.bf16.msra.mxu0 %v2149
    %2453 = vmatpush.bf16.msra.mxu0 %v2141
    %2454 = vmatmul.bf16.gmra.mxu0 %v1542
    %v2455 = vpop.f32.mrf.mxu0
    %v2456 = vadd.f32 %v2443, %v2455
    %v2457 = vpop.f32.mrf.mxu0
    %2458 = vdwg.mxu0
    %2459 = vmatpush.bf16.msra.mxu0 %v2134
    %2460 = vmatpush.bf16.msra.mxu0 %v2126
    %2461 = vmatpush.bf16.msra.mxu0 %v2118
    %2462 = vmatpush.bf16.msra.mxu0 %v2110
    %2463 = vmatpush.bf16.msra.mxu0 %v2102
    %2464 = vmatpush.bf16.msra.mxu0 %v2094
    %2465 = vmatpush.bf16.msra.mxu0 %v2086
    %2466 = vmatpush.bf16.msra.mxu0 %v2078
    %2467 = vmatmul.bf16.gmra.mxu0 %v1541
    %v2468 = vpop.f32.mrf.mxu0
    %v2469 = vadd.f32 %v1678, %v2468
    %v2470 = vpop.f32.mrf.mxu0
    %2471 = vdwg.mxu0
    %2472 = vmatpush.bf16.msra.mxu0 %v2198
    %2473 = vmatpush.bf16.msra.mxu0 %v2190
    %2474 = vmatpush.bf16.msra.mxu0 %v2182
    %2475 = vmatpush.bf16.msra.mxu0 %v2174
    %2476 = vmatpush.bf16.msra.mxu0 %v2166
    %2477 = vmatpush.bf16.msra.mxu0 %v2158
    %2478 = vmatpush.bf16.msra.mxu0 %v2150
    %2479 = vmatpush.bf16.msra.mxu0 %v2142
    %2480 = vmatmul.bf16.gmra.mxu0 %v1542
    %v2481 = vpop.f32.mrf.mxu0
    %v2482 = vadd.f32 %v2469, %v2481
    %v2483 = vpop.f32.mrf.mxu0
    %2484 = vdwg.mxu0
    %2485 = vmatpush.bf16.msra.mxu0 %v2135
    %2486 = vmatpush.bf16.msra.mxu0 %v2127
    %2487 = vmatpush.bf16.msra.mxu0 %v2119
    %2488 = vmatpush.bf16.msra.mxu0 %v2111
    %2489 = vmatpush.bf16.msra.mxu0 %v2103
    %2490 = vmatpush.bf16.msra.mxu0 %v2095
    %2491 = vmatpush.bf16.msra.mxu0 %v2087
    %2492 = vmatpush.bf16.msra.mxu0 %v2079
    %2493 = vmatmul.bf16.gmra.mxu0 %v1541
    %v2494 = vpop.f32.mrf.mxu0
    %v2495 = vadd.f32 %v1679, %v2494
    %v2496 = vpop.f32.mrf.mxu0
    %2497 = vdwg.mxu0
    %2498 = vmatpush.bf16.msra.mxu0 %v2199
    %2499 = vmatpush.bf16.msra.mxu0 %v2191
    %2500 = vmatpush.bf16.msra.mxu0 %v2183
    %2501 = vmatpush.bf16.msra.mxu0 %v2175
    %2502 = vmatpush.bf16.msra.mxu0 %v2167
    %2503 = vmatpush.bf16.msra.mxu0 %v2159
    %2504 = vmatpush.bf16.msra.mxu0 %v2151
    %2505 = vmatpush.bf16.msra.mxu0 %v2143
    %2506 = vmatmul.bf16.gmra.mxu0 %v1542
    %v2507 = vpop.f32.mrf.mxu0
    %v2508 = vadd.f32 %v2495, %v2507
    %v2509 = vpop.f32.mrf.mxu0
    %2510 = vdwg.mxu0
    %2511 = vmatpush.bf16.msra.mxu0 %v2136
    %2512 = vmatpush.bf16.msra.mxu0 %v2128
    %2513 = vmatpush.bf16.msra.mxu0 %v2120
    %2514 = vmatpush.bf16.msra.mxu0 %v2112
    %2515 = vmatpush.bf16.msra.mxu0 %v2104
    %2516 = vmatpush.bf16.msra.mxu0 %v2096
    %2517 = vmatpush.bf16.msra.mxu0 %v2088
    %2518 = vmatpush.bf16.msra.mxu0 %v2080
    %2519 = vmatmul.bf16.gmra.mxu0 %v1541
    %v2520 = vpop.f32.mrf.mxu0
    %v2521 = vadd.f32 %v1680, %v2520
    %v2522 = vpop.f32.mrf.mxu0
    %2523 = vdwg.mxu0
    %2524 = vmatpush.bf16.msra.mxu0 %v2200
    %2525 = vmatpush.bf16.msra.mxu0 %v2192
    %2526 = vmatpush.bf16.msra.mxu0 %v2184
    %2527 = vmatpush.bf16.msra.mxu0 %v2176
    %2528 = vmatpush.bf16.msra.mxu0 %v2168
    %2529 = vmatpush.bf16.msra.mxu0 %v2160
    %2530 = vmatpush.bf16.msra.mxu0 %v2152
    %2531 = vmatpush.bf16.msra.mxu0 %v2144
    %2532 = vmatmul.bf16.gmra.mxu0 %v1542
    %v2533 = vpop.f32.mrf.mxu0
    %v2534 = vadd.f32 %v2521, %v2533
    %v2535 = vpop.f32.mrf.mxu0
    %2536 = vdwg.mxu0
    %v2537 = vmax.f32 %v2352, 0.0
    %v2538 = vmax.f32 %v2378, 0.0
    %v2539 = vmax.f32 %v2404, 0.0
    %v2540 = vmax.f32 %v2430, 0.0
    %v2541 = vmax.f32 %v2456, 0.0
    %v2542 = vmax.f32 %v2482, 0.0
    %v2543 = vmax.f32 %v2508, 0.0
    %v2544 = vmax.f32 %v2534, 0.0
    %v2545 = vld [vmem:[%s7] sm:$0xff]
    %v2546 = vunpack.c.l.bf16 %v2545
    %v2547 = vunpack.c.h.bf16 %v2545
    %v2550 = vperm.slane %v2546, 0
    %v2551 = vperm.slane %v2546, 2
    %v2552 = vperm.slane %v2546, 4
    %v2553 = vperm.slane %v2546, 6
    %v2554 = vperm.slane %v2547, 0
    %v2555 = vperm.slane %v2547, 2
    %v2556 = vperm.slane %v2547, 4
    %v2557 = vperm.slane %v2547, 6
    %v2566 = vperm.slane %v2550, 0
    %v2567 = vperm.slane %v2551, 0
    %v2568 = vperm.slane %v2552, 0
    %v2569 = vperm.slane %v2553, 0
    %v2570 = vperm.slane %v2554, 0
    %v2571 = vperm.slane %v2555, 0
    %v2572 = vperm.slane %v2556, 0
    %v2573 = vperm.slane %v2557, 0
    %v2574 = vmul.f32 %v2537, %v2566
    %v2575 = vmul.f32 %v2538, %v2567
    %v2576 = vmul.f32 %v2539, %v2568
    %v2577 = vmul.f32 %v2540, %v2569
    %v2578 = vmul.f32 %v2541, %v2570
    %v2579 = vmul.f32 %v2542, %v2571
    %v2580 = vmul.f32 %v2543, %v2572
    %v2581 = vmul.f32 %v2544, %v2573
    %vm2582 = vcmask 1041408
    %v2583 = vsel %vm2582, %v2574, 0.0
    %v2584 = vsel %vm2582, %v2575, 0.0
    %v2585 = vadd.f32 %v2583, %v2584
    %v2586 = vsel %vm2582, %v2576, 0.0
    %v2587 = vadd.f32 %v2585, %v2586
    %v2588 = vsel %vm2582, %v2577, 0.0
    %v2589 = vadd.f32 %v2587, %v2588
    %v2590 = vsel %vm2582, %v2578, 0.0
    %v2591 = vadd.f32 %v2589, %v2590
    %v2592 = vsel %vm2582, %v2579, 0.0
    %v2593 = vadd.f32 %v2591, %v2592
    %v2594 = vsel %vm2582, %v2580, 0.0
    %v2595 = vadd.f32 %v2593, %v2594
    %v2596 = vsel %vm2582, %v2581, 0.0
    %v2597 = vadd.f32 %v2595, %v2596
    %2598 = vadd.xlane.f32.xlu0 %v2597
    %v2599 = vpop.xlane.xlu0 %2598
    %s2600 = sld [smem:[#allocation2]]
    %v2601 = vstv %s2600
    %v2602 = vadd.f32 %v2599, %v2601
    %v2604 = vlaneseq
    %v2605 = vand.u32 %v2604, 127
    %v2606 = vperm.slane %v2602, %v2605
    %vm2608 = vcmask 8192
    %2609 = vst.msk [vmem:[#allocation15] sm:$0x1] %vm2608, %v2606
    // Predicated region
    $region66: #{tpu_custom_call.1} parent=1 // pred_check
      _
    $region67: #{tpu_custom_call.1} parent=1 // pred_check_branch
      %2611 = sbr.rel (0) target = $region69
    $region68: #{tpu_custom_call.1} parent=1 // pred_region
      %2613 = vsyncadd [#allocation5], 0
      %s2615 = sshll.u32 [#allocation15], 4
      %s2616 = int_to_ptr.vmem [resolvable:$true] %s2615
      %s2617 = sshll.u32 %s9, 4
      %s2618 = int_to_ptr.hbm [resolvable:$true] %s2617
      %2620 = dma.vmem_to_hbm [thread:$0]  %s2616, 16, %s2618, [#allocation5]
    $region69: #{tpu_custom_call.1} parent=1 // pred_fallthru
      _
    // Predicated region
    $region70: #{tpu_custom_call.1} parent=1 // pred_check
      _
    $region71: #{tpu_custom_call.1} parent=1 // pred_check_branch
      %2622 = sbr.rel (0) target = $region73
    $region72: #{tpu_custom_call.1} parent=1 // pred_region
      %2624 = dma.done [#allocation5], 16
    $region73: #{tpu_custom_call.1} parent=1 // pred_fallthru
      _
    %2625 = vsyncpa [#allocation4], 1
    %2626 = vsyncpa [#allocation7], 1
    %2627 = vsyncpa [#allocation10], 1
    %2628 = vsyncpa [#allocation13], 1
    %2629 = vsyncpa [#allocation5], 1

</llo_original>
